<compile_context>
chip_gen: v5e
topology: v5e:2x2
jax: 0.10.0
libtpu: 0.0.40
codegen_flags: <defaults>
</compile_context>

<pallas_src>
import functools

import jax
import jax.numpy as jnp
from jax.experimental import pallas as pl
from jax.experimental.pallas import tpu as pltpu


# ----------------------------------------------------------------------------
# Fused kernel: GAT heads -> concat -> reshape_fc -> (+res) -> LayerNorm
# grid = (B // Bt,)
# ----------------------------------------------------------------------------
def _fused_attention_kernel(x_ref, adj_ref, waug_ref, wfc_ref, bfc_ref, out_ref,
                            *, nheads, fout, add_residual):
    Bt, N, Fin = x_ref.shape
    H = nheads * fout

    Waug = waug_ref[...]                  # (Fin, H + 2*nheads)
    Wfc = wfc_ref[...]                    # (H, Fout)
    bfc = bfc_ref[...]                    # (1, Fout)

    # One sublane/lane-dense MXU pass for all Bt batch elements: every head's Wh plus
    # the per-head a1/a2 attention scalars come out of the same matmul.
    stack_rows = (N % 8 == 0)             # layout-trivial leading-dim collapse
    if stack_rows:
        x_all = x_ref[...].reshape(Bt * N, Fin)
        proj_all = jnp.dot(x_all, Waug, preferred_element_type=jnp.float32)

    for bi in range(Bt):                  # static unroll (Bt is small)
        x_b = x_ref[bi]                   # (N, Fin)
        if stack_rows:
            proj = proj_all[bi * N:(bi + 1) * N, :]            # (N, H + 2*nheads)
        else:
            proj = jnp.dot(x_b, Waug, preferred_element_type=jnp.float32)

        Wh_all = proj[:, :H]                                    # (N, H) head-major cols
        adj = adj_ref[bi]                                       # (N, N)
        mask = adj > 0

        head_outs = []
        for hh in range(nheads):          # static unroll (nheads is small)
            s1 = proj[:, H + hh:H + hh + 1]                     # (N, 1)  Wh @ a1
            s2 = proj[:, H + nheads + hh:H + nheads + hh + 1]   # (N, 1)  Wh @ a2

            # e = LeakyReLU(Wh_a1 @ Wh_a2^T)   (outer product, slope 0.01)
            z = s1 * jnp.transpose(s2)                          # (N, N)
            e = jnp.where(z >= 0, z, 0.01 * z)

            # masked softmax over the last dim, then re-zero masked entries
            # (matches the reference torch.where(adj > 0, attention, zeros))
            logits = jnp.where(mask, e, jnp.float32(-9.0e15))
            m = jnp.max(logits, axis=-1, keepdims=True)
            p = jnp.exp(logits - m)
            denom = jnp.sum(p, axis=-1, keepdims=True)
            att = p / denom
            att = jnp.where(mask, att, jnp.zeros_like(att))

            # h' = att @ Wh_head ; concat=True -> ELU(alpha=1)
            hp = jnp.dot(att, Wh_all[:, hh * fout:(hh + 1) * fout],
                         preferred_element_type=jnp.float32)    # (N, Fout)
            head_outs.append(jnp.where(hp > 0, hp, jnp.exp(hp) - 1.0))

        # torch.cat(..., dim=2)  -> lane-dense (N, nheads*Fout), then reshape_fc
        cat = jnp.concatenate(head_outs, axis=-1)               # (N, H)
        y = jnp.dot(cat, Wfc, preferred_element_type=jnp.float32) + bfc
        if add_residual:
            y = y + x_b

        # LayerNorm over last dim (fresh nn.LayerNorm: weight=1, bias=0, eps=1e-5)
        mu = jnp.mean(y, axis=-1, keepdims=True)
        d = y - mu
        var = jnp.mean(d * d, axis=-1, keepdims=True)
        out_ref[bi] = (d * jax.lax.rsqrt(var + 1e-5)).astype(out_ref.dtype)


# ----------------------------------------------------------------------------
# Wrapper
# ----------------------------------------------------------------------------
def _pick_batch_block(B, N, Fin, Fout, nheads):
    """Largest divisor of B (capped) whose per-step working set stays small in VMEM."""
    bytes_per_elem = (4 * (N * Fin + N * N + N * Fout) * 2          # double-buffered blocks
                      + 4 * N * (nheads * Fout + 2 * nheads))       # projection intermediate
    vmem_budget = 8 * 1024 * 1024
    cap = max(1, min(8, vmem_budget // max(bytes_per_elem, 1)))     # also bounds unrolling
    bt = 1
    for cand in range(1, min(B, cap) + 1):
        if B % cand == 0:
            bt = cand
    return bt


def attention_forward(x, adj, params):
    """JAX/Pallas equivalent of Attention.forward(x, adj)."""
    B, N, Fin = x.shape
    W, a, Wfc, bfc = params["W"], params["a"], params["Wfc"], params["bfc"]
    nheads, _, Fout = W.shape
    H = nheads * Fout

    # Augmented projection weights: [W_0 | ... | W_{nh-1} | W@a1 | W@a2]  (Fin, H + 2*nheads)
    W_all = jnp.transpose(W, (1, 0, 2)).reshape(Fin, H)             # col block h == W[h]
    Wa1 = jnp.einsum("hif,hf->ih", W, a[:, :Fout])                  # (Fin, nheads)
    Wa2 = jnp.einsum("hif,hf->ih", W, a[:, Fout:])                  # (Fin, nheads)
    W_aug = jnp.concatenate([W_all, Wa1, Wa2], axis=-1).astype(jnp.float32)

    add_residual = (Fout == Fin)                                    # static shape check
    Bt = _pick_batch_block(B, N, Fin, Fout, nheads)

    kernel = functools.partial(_fused_attention_kernel,
                               nheads=nheads, fout=Fout, add_residual=add_residual)
    return pl.pallas_call(
        kernel,
        out_shape=jax.ShapeDtypeStruct((B, N, Fout), jnp.float32),
        grid_spec=pltpu.PrefetchScalarGridSpec(
            num_scalar_prefetch=0,
            grid=(B // Bt,),
            in_specs=[
                pl.BlockSpec((Bt, N, Fin), lambda b: (b, 0, 0)),
                pl.BlockSpec((Bt, N, N), lambda b: (b, 0, 0)),
                pl.BlockSpec((Fin, H + 2 * nheads), lambda b: (0, 0)),
                pl.BlockSpec((H, Fout), lambda b: (0, 0)),
                pl.BlockSpec((1, Fout), lambda b: (0, 0)),
            ],
            out_specs=pl.BlockSpec((Bt, N, Fout), lambda b: (b, 0, 0)),
        ),
        compiler_params=pltpu.CompilerParams(
            dimension_semantics=("parallel",)),
    )(x, adj, W_aug, Wfc, bfc)


# ----------------------------------------------------------------------------
# Parameter init (xavier-uniform-style for W/a, PyTorch-Linear-style for reshape_fc)
# ----------------------------------------------------------------------------
def init_params(key, in_features, out_features, nheads):
    k1, k2, k3, k4 = jax.random.split(key, 4)
    gain = 1.414
    lim_W = gain * (6.0 / (in_features + out_features)) ** 0.5
    W = jax.random.uniform(k1, (nheads, in_features, out_features),
                           minval=-lim_W, maxval=lim_W, dtype=jnp.float32)
    lim_a = gain * (6.0 / (2 * out_features + 1)) ** 0.5
    a = jax.random.uniform(k2, (nheads, 2 * out_features),
                           minval=-lim_a, maxval=lim_a, dtype=jnp.float32)
    fan_in = nheads * out_features
    lim_fc = 1.0 / (fan_in ** 0.5)
    Wfc = jax.random.uniform(k3, (fan_in, out_features),
                             minval=-lim_fc, maxval=lim_fc, dtype=jnp.float32)
    bfc = jax.random.uniform(k4, (1, out_features),
                             minval=-lim_fc, maxval=lim_fc, dtype=jnp.float32)
    return {"W": W, "a": a, "Wfc": Wfc, "bfc": bfc}


# ----------------------------------------------------------------------------
# Pure-JAX reference (mirrors the PyTorch module) for a numerical sanity check
# ----------------------------------------------------------------------------
def attention_reference(x, adj, params):
    W, a, Wfc, bfc = params["W"], params["a"], params["Wfc"], params["bfc"]
    nheads, Fin, Fout = W.shape
    hi = jax.lax.Precision.HIGHEST
    outs = []
    mask = adj > 0
    for h in range(nheads):
        Wh = jnp.einsum("bnf,fo->bno", x, W[h], precision=hi)
        Wh_a1 = jnp.einsum("bno,o->bn", Wh, a[h, :Fout], precision=hi)[..., None]
        Wh_a2 = jnp.einsum("bno,o->bn", Wh, a[h, Fout:], precision=hi)[..., None]
        z = Wh_a1 * jnp.swapaxes(Wh_a2, 1, 2)
        e = jnp.where(z >= 0, z, 0.01 * z)
        logits = jnp.where(mask, e, -9.0e15)
        att = jax.nn.softmax(logits, axis=-1)
        att = jnp.where(mask, att, 0.0)
        hp = jnp.einsum("bij,bjo->bio", att, Wh, precision=hi)
        outs.append(jnp.where(hp > 0, hp, jnp.exp(hp) - 1.0))
    cat = jnp.concatenate(outs, axis=-1)
    y = jnp.einsum("bnh,ho->bno", cat, Wfc, precision=hi) + bfc
    if Fout == x.shape[-1]:
        y = y + x
    mu = jnp.mean(y, axis=-1, keepdims=True)
    var = jnp.mean((y - mu) ** 2, axis=-1, keepdims=True)
    return (y - mu) * jax.lax.rsqrt(var + 1e-5)


if __name__ == "__main__":
    key = jax.random.PRNGKey(0)
    kx, kadj, kp = jax.random.split(key, 3)

    B, N = 2, 8            # batch_size, max_layer_length (nodes)
    Fin = Fout = 32        # in_features == out_features -> residual + LayerNorm path
    nheads = 4             # nheads * Fout = 128 -> lane-dense concat / fc matmul

    x = jax.random.normal(kx, (B, N, Fin), dtype=jnp.float32)
    # random sparse-ish adjacency with self loops, values in {0, 1}
    adj = (jax.random.uniform(kadj, (B, N, N)) > 0.5).astype(jnp.float32)
    adj = jnp.maximum(adj, jnp.eye(N, dtype=jnp.float32)[None])

    params = init_params(kp, Fin, Fout, nheads)

    out = attention_forward(x, adj, params)
    jax.block_until_ready(out)
    assert out.shape == (B, N, Fout)

    ref = attention_reference(x, adj, params)
    err = float(jnp.max(jnp.abs(out - ref)))
    assert err < 2e-3, f"mismatch vs reference: max abs err = {err}"

    print("KERNEL_OK")
</pallas_src>

<mosaic_0001>
module attributes {stable_mosaic.version = 11 : i64} {
  func.func @_fused_attention_kernel(%arg0: i32, %arg1: memref<2x8x32xf32, #tpu.memory_space<vmem>>, %arg2: memref<2x8x8xf32, #tpu.memory_space<vmem>>, %arg3: memref<32x136xf32, #tpu.memory_space<vmem>>, %arg4: memref<128x32xf32, #tpu.memory_space<vmem>>, %arg5: memref<1x32xf32, #tpu.memory_space<vmem>>, %arg6: memref<2x8x32xf32, #tpu.memory_space<vmem>>) attributes {dimension_semantics = [#tpu.dimension_semantics<parallel>], iteration_bounds = array<i64: 1>, scalar_prefetch = 0 : i64, scratch_operands = 0 : i64, tpu.core_type = #tpu.core_type<tc>, window_params = [{transform_indices = @transform_0, window_bounds = array<i64: 2, 8, 32>}, {transform_indices = @transform_1, window_bounds = array<i64: 2, 8, 8>}, {pipeline_mode = #tpu.pipeline_mode<synchronous>, transform_indices = @transform_2, window_bounds = array<i64: 32, 136>}, {pipeline_mode = #tpu.pipeline_mode<synchronous>, transform_indices = @transform_3, window_bounds = array<i64: 128, 32>}, {pipeline_mode = #tpu.pipeline_mode<synchronous>, transform_indices = @transform_4, window_bounds = array<i64: 1, 32>}, {transform_indices = @transform_5, window_bounds = array<i64: 2, 8, 32>}]} {
    %c0 = arith.constant 0 : index
    %c0_0 = arith.constant 0 : index
    %0 = vector.load %arg3[%c0, %c0_0] : memref<32x136xf32, #tpu.memory_space<vmem>>, vector<32x136xf32>
    %c0_1 = arith.constant 0 : index
    %c0_2 = arith.constant 0 : index
    %1 = vector.load %arg4[%c0_1, %c0_2] : memref<128x32xf32, #tpu.memory_space<vmem>>, vector<128x32xf32>
    %c0_3 = arith.constant 0 : index
    %c0_4 = arith.constant 0 : index
    %2 = vector.load %arg5[%c0_3, %c0_4] : memref<1x32xf32, #tpu.memory_space<vmem>>, vector<1x32xf32>
    %c0_5 = arith.constant 0 : index
    %c0_6 = arith.constant 0 : index
    %c0_7 = arith.constant 0 : index
    %3 = vector.load %arg1[%c0_5, %c0_6, %c0_7] : memref<2x8x32xf32, #tpu.memory_space<vmem>>, vector<2x8x32xf32>
    %4 = vector.shape_cast %3 : vector<2x8x32xf32> to vector<16x32xf32>
    %cst = arith.constant dense<0.000000e+00> : vector<16x136xf32>
    %5 = tpu.matmul %4, %0, %cst {dimension_numbers = #tpu.dot_dimension_numbers<[1], [0], [0], [1], [0, 0, 1, 1], [], []>} : vector<16x32xf32>, vector<32x136xf32>, vector<16x136xf32> -> vector<16x136xf32>
    %c0_8 = arith.constant 0 : index
    %c0_9 = arith.constant 0 : index
    %c0_10 = arith.constant 0 : index
    %6 = vector.load %arg1[%c0_8, %c0_9, %c0_10] : memref<2x8x32xf32, #tpu.memory_space<vmem>>, vector<1x8x32xf32>
    %7 = vector.shape_cast %6 : vector<1x8x32xf32> to vector<8x32xf32>
    %8 = vector.extract_strided_slice %5 {offsets = [0, 0], sizes = [8, 136], strides = [1, 1]} : vector<16x136xf32> to vector<8x136xf32>
    %9 = vector.extract_strided_slice %8 {offsets = [0, 0], sizes = [8, 128], strides = [1, 1]} : vector<8x136xf32> to vector<8x128xf32>
    %c0_11 = arith.constant 0 : index
    %c0_12 = arith.constant 0 : index
    %c0_13 = arith.constant 0 : index
    %10 = vector.load %arg2[%c0_11, %c0_12, %c0_13] : memref<2x8x8xf32, #tpu.memory_space<vmem>>, vector<1x8x8xf32>
    %11 = vector.shape_cast %10 : vector<1x8x8xf32> to vector<8x8xf32>
    %cst_14 = arith.constant 0.000000e+00 : f32
    %12 = vector.broadcast %cst_14 : f32 to vector<8x8xf32>
    %13 = arith.cmpf ogt, %11, %12 : vector<8x8xf32>
    %14 = vector.extract_strided_slice %8 {offsets = [0, 128], sizes = [8, 1], strides = [1, 1]} : vector<8x136xf32> to vector<8x1xf32>
    %15 = vector.extract_strided_slice %8 {offsets = [0, 132], sizes = [8, 1], strides = [1, 1]} : vector<8x136xf32> to vector<8x1xf32>
    %16 = tpu.transpose %15, [1, 0] : vector<8x1xf32> -> vector<1x8xf32>
    %17 = vector.broadcast %14 : vector<8x1xf32> to vector<8x8xf32>
    %18 = vector.broadcast %16 : vector<1x8xf32> to vector<8x8xf32>
    %19 = arith.mulf %17, %18 : vector<8x8xf32>
    %cst_15 = arith.constant 0.000000e+00 : f32
    %20 = vector.broadcast %cst_15 : f32 to vector<8x8xf32>
    %21 = arith.cmpf oge, %19, %20 : vector<8x8xf32>
    %cst_16 = arith.constant 0.00999999977 : f32
    %22 = vector.broadcast %cst_16 : f32 to vector<8x8xf32>
    %23 = arith.mulf %22, %19 : vector<8x8xf32>
    %24 = arith.select %21, %19, %23 : vector<8x8xi1>, vector<8x8xf32>
    %cst_17 = arith.constant -9.000000e+15 : f32
    %25 = vector.broadcast %cst_17 : f32 to vector<8x8xf32>
    %26 = arith.select %13, %24, %25 : vector<8x8xi1>, vector<8x8xf32>
    %cst_18 = arith.constant dense<0xFF800000> : vector<8xf32>
    %27 = vector.multi_reduction <maximumf>, %26, %cst_18 [1] : vector<8x8xf32> to vector<8xf32>
    %28 = vector.shape_cast %27 : vector<8xf32> to vector<8x1xf32>
    %29 = vector.broadcast %28 : vector<8x1xf32> to vector<8x8xf32>
    %30 = arith.subf %26, %29 : vector<8x8xf32>
    %31 = math.exp %30 : vector<8x8xf32>
    %cst_19 = arith.constant dense<0.000000e+00> : vector<8xf32>
    %32 = vector.multi_reduction <add>, %31, %cst_19 [1] : vector<8x8xf32> to vector<8xf32>
    %33 = vector.shape_cast %32 : vector<8xf32> to vector<8x1xf32>
    %34 = vector.broadcast %33 : vector<8x1xf32> to vector<8x8xf32>
    %35 = arith.divf %31, %34 : vector<8x8xf32>
    %cst_20 = arith.constant 0.000000e+00 : f32
    %36 = vector.broadcast %cst_20 : f32 to vector<8x8xf32>
    %37 = arith.select %13, %35, %36 : vector<8x8xi1>, vector<8x8xf32>
    %38 = vector.extract_strided_slice %9 {offsets = [0, 0], sizes = [8, 32], strides = [1, 1]} : vector<8x128xf32> to vector<8x32xf32>
    %cst_21 = arith.constant dense<0.000000e+00> : vector<8x32xf32>
    %39 = tpu.matmul %37, %38, %cst_21 {dimension_numbers = #tpu.dot_dimension_numbers<[1], [0], [0], [1], [0, 0, 1, 1], [], []>} : vector<8x8xf32>, vector<8x32xf32>, vector<8x32xf32> -> vector<8x32xf32>
    %cst_22 = arith.constant 0.000000e+00 : f32
    %40 = vector.broadcast %cst_22 : f32 to vector<8x32xf32>
    %41 = arith.cmpf ogt, %39, %40 : vector<8x32xf32>
    %42 = math.exp %39 : vector<8x32xf32>
    %cst_23 = arith.constant 1.000000e+00 : f32
    %43 = vector.broadcast %cst_23 : f32 to vector<8x32xf32>
    %44 = arith.subf %42, %43 : vector<8x32xf32>
    %45 = arith.select %41, %39, %44 : vector<8x32xi1>, vector<8x32xf32>
    %46 = vector.extract_strided_slice %8 {offsets = [0, 129], sizes = [8, 1], strides = [1, 1]} : vector<8x136xf32> to vector<8x1xf32>
    %47 = vector.extract_strided_slice %8 {offsets = [0, 133], sizes = [8, 1], strides = [1, 1]} : vector<8x136xf32> to vector<8x1xf32>
    %48 = tpu.transpose %47, [1, 0] : vector<8x1xf32> -> vector<1x8xf32>
    %49 = vector.broadcast %46 : vector<8x1xf32> to vector<8x8xf32>
    %50 = vector.broadcast %48 : vector<1x8xf32> to vector<8x8xf32>
    %51 = arith.mulf %49, %50 : vector<8x8xf32>
    %cst_24 = arith.constant 0.000000e+00 : f32
    %52 = vector.broadcast %cst_24 : f32 to vector<8x8xf32>
    %53 = arith.cmpf oge, %51, %52 : vector<8x8xf32>
    %cst_25 = arith.constant 0.00999999977 : f32
    %54 = vector.broadcast %cst_25 : f32 to vector<8x8xf32>
    %55 = arith.mulf %54, %51 : vector<8x8xf32>
    %56 = arith.select %53, %51, %55 : vector<8x8xi1>, vector<8x8xf32>
    %cst_26 = arith.constant -9.000000e+15 : f32
    %57 = vector.broadcast %cst_26 : f32 to vector<8x8xf32>
    %58 = arith.select %13, %56, %57 : vector<8x8xi1>, vector<8x8xf32>
    %cst_27 = arith.constant dense<0xFF800000> : vector<8xf32>
    %59 = vector.multi_reduction <maximumf>, %58, %cst_27 [1] : vector<8x8xf32> to vector<8xf32>
    %60 = vector.shape_cast %59 : vector<8xf32> to vector<8x1xf32>
    %61 = vector.broadcast %60 : vector<8x1xf32> to vector<8x8xf32>
    %62 = arith.subf %58, %61 : vector<8x8xf32>
    %63 = math.exp %62 : vector<8x8xf32>
    %cst_28 = arith.constant dense<0.000000e+00> : vector<8xf32>
    %64 = vector.multi_reduction <add>, %63, %cst_28 [1] : vector<8x8xf32> to vector<8xf32>
    %65 = vector.shape_cast %64 : vector<8xf32> to vector<8x1xf32>
    %66 = vector.broadcast %65 : vector<8x1xf32> to vector<8x8xf32>
    %67 = arith.divf %63, %66 : vector<8x8xf32>
    %cst_29 = arith.constant 0.000000e+00 : f32
    %68 = vector.broadcast %cst_29 : f32 to vector<8x8xf32>
    %69 = arith.select %13, %67, %68 : vector<8x8xi1>, vector<8x8xf32>
    %70 = vector.extract_strided_slice %9 {offsets = [0, 32], sizes = [8, 32], strides = [1, 1]} : vector<8x128xf32> to vector<8x32xf32>
    %cst_30 = arith.constant dense<0.000000e+00> : vector<8x32xf32>
    %71 = tpu.matmul %69, %70, %cst_30 {dimension_numbers = #tpu.dot_dimension_numbers<[1], [0], [0], [1], [0, 0, 1, 1], [], []>} : vector<8x8xf32>, vector<8x32xf32>, vector<8x32xf32> -> vector<8x32xf32>
    %cst_31 = arith.constant 0.000000e+00 : f32
    %72 = vector.broadcast %cst_31 : f32 to vector<8x32xf32>
    %73 = arith.cmpf ogt, %71, %72 : vector<8x32xf32>
    %74 = math.exp %71 : vector<8x32xf32>
    %cst_32 = arith.constant 1.000000e+00 : f32
    %75 = vector.broadcast %cst_32 : f32 to vector<8x32xf32>
    %76 = arith.subf %74, %75 : vector<8x32xf32>
    %77 = arith.select %73, %71, %76 : vector<8x32xi1>, vector<8x32xf32>
    %78 = vector.extract_strided_slice %8 {offsets = [0, 130], sizes = [8, 1], strides = [1, 1]} : vector<8x136xf32> to vector<8x1xf32>
    %79 = vector.extract_strided_slice %8 {offsets = [0, 134], sizes = [8, 1], strides = [1, 1]} : vector<8x136xf32> to vector<8x1xf32>
    %80 = tpu.transpose %79, [1, 0] : vector<8x1xf32> -> vector<1x8xf32>
    %81 = vector.broadcast %78 : vector<8x1xf32> to vector<8x8xf32>
    %82 = vector.broadcast %80 : vector<1x8xf32> to vector<8x8xf32>
    %83 = arith.mulf %81, %82 : vector<8x8xf32>
    %cst_33 = arith.constant 0.000000e+00 : f32
    %84 = vector.broadcast %cst_33 : f32 to vector<8x8xf32>
    %85 = arith.cmpf oge, %83, %84 : vector<8x8xf32>
    %cst_34 = arith.constant 0.00999999977 : f32
    %86 = vector.broadcast %cst_34 : f32 to vector<8x8xf32>
    %87 = arith.mulf %86, %83 : vector<8x8xf32>
    %88 = arith.select %85, %83, %87 : vector<8x8xi1>, vector<8x8xf32>
    %cst_35 = arith.constant -9.000000e+15 : f32
    %89 = vector.broadcast %cst_35 : f32 to vector<8x8xf32>
    %90 = arith.select %13, %88, %89 : vector<8x8xi1>, vector<8x8xf32>
    %cst_36 = arith.constant dense<0xFF800000> : vector<8xf32>
    %91 = vector.multi_reduction <maximumf>, %90, %cst_36 [1] : vector<8x8xf32> to vector<8xf32>
    %92 = vector.shape_cast %91 : vector<8xf32> to vector<8x1xf32>
    %93 = vector.broadcast %92 : vector<8x1xf32> to vector<8x8xf32>
    %94 = arith.subf %90, %93 : vector<8x8xf32>
    %95 = math.exp %94 : vector<8x8xf32>
    %cst_37 = arith.constant dense<0.000000e+00> : vector<8xf32>
    %96 = vector.multi_reduction <add>, %95, %cst_37 [1] : vector<8x8xf32> to vector<8xf32>
    %97 = vector.shape_cast %96 : vector<8xf32> to vector<8x1xf32>
    %98 = vector.broadcast %97 : vector<8x1xf32> to vector<8x8xf32>
    %99 = arith.divf %95, %98 : vector<8x8xf32>
    %cst_38 = arith.constant 0.000000e+00 : f32
    %100 = vector.broadcast %cst_38 : f32 to vector<8x8xf32>
    %101 = arith.select %13, %99, %100 : vector<8x8xi1>, vector<8x8xf32>
    %102 = vector.extract_strided_slice %9 {offsets = [0, 64], sizes = [8, 32], strides = [1, 1]} : vector<8x128xf32> to vector<8x32xf32>
    %cst_39 = arith.constant dense<0.000000e+00> : vector<8x32xf32>
    %103 = tpu.matmul %101, %102, %cst_39 {dimension_numbers = #tpu.dot_dimension_numbers<[1], [0], [0], [1], [0, 0, 1, 1], [], []>} : vector<8x8xf32>, vector<8x32xf32>, vector<8x32xf32> -> vector<8x32xf32>
    %cst_40 = arith.constant 0.000000e+00 : f32
    %104 = vector.broadcast %cst_40 : f32 to vector<8x32xf32>
    %105 = arith.cmpf ogt, %103, %104 : vector<8x32xf32>
    %106 = math.exp %103 : vector<8x32xf32>
    %cst_41 = arith.constant 1.000000e+00 : f32
    %107 = vector.broadcast %cst_41 : f32 to vector<8x32xf32>
    %108 = arith.subf %106, %107 : vector<8x32xf32>
    %109 = arith.select %105, %103, %108 : vector<8x32xi1>, vector<8x32xf32>
    %110 = vector.extract_strided_slice %8 {offsets = [0, 131], sizes = [8, 1], strides = [1, 1]} : vector<8x136xf32> to vector<8x1xf32>
    %111 = vector.extract_strided_slice %8 {offsets = [0, 135], sizes = [8, 1], strides = [1, 1]} : vector<8x136xf32> to vector<8x1xf32>
    %112 = tpu.transpose %111, [1, 0] : vector<8x1xf32> -> vector<1x8xf32>
    %113 = vector.broadcast %110 : vector<8x1xf32> to vector<8x8xf32>
    %114 = vector.broadcast %112 : vector<1x8xf32> to vector<8x8xf32>
    %115 = arith.mulf %113, %114 : vector<8x8xf32>
    %cst_42 = arith.constant 0.000000e+00 : f32
    %116 = vector.broadcast %cst_42 : f32 to vector<8x8xf32>
    %117 = arith.cmpf oge, %115, %116 : vector<8x8xf32>
    %cst_43 = arith.constant 0.00999999977 : f32
    %118 = vector.broadcast %cst_43 : f32 to vector<8x8xf32>
    %119 = arith.mulf %118, %115 : vector<8x8xf32>
    %120 = arith.select %117, %115, %119 : vector<8x8xi1>, vector<8x8xf32>
    %cst_44 = arith.constant -9.000000e+15 : f32
    %121 = vector.broadcast %cst_44 : f32 to vector<8x8xf32>
    %122 = arith.select %13, %120, %121 : vector<8x8xi1>, vector<8x8xf32>
    %cst_45 = arith.constant dense<0xFF800000> : vector<8xf32>
    %123 = vector.multi_reduction <maximumf>, %122, %cst_45 [1] : vector<8x8xf32> to vector<8xf32>
    %124 = vector.shape_cast %123 : vector<8xf32> to vector<8x1xf32>
    %125 = vector.broadcast %124 : vector<8x1xf32> to vector<8x8xf32>
    %126 = arith.subf %122, %125 : vector<8x8xf32>
    %127 = math.exp %126 : vector<8x8xf32>
    %cst_46 = arith.constant dense<0.000000e+00> : vector<8xf32>
    %128 = vector.multi_reduction <add>, %127, %cst_46 [1] : vector<8x8xf32> to vector<8xf32>
    %129 = vector.shape_cast %128 : vector<8xf32> to vector<8x1xf32>
    %130 = vector.broadcast %129 : vector<8x1xf32> to vector<8x8xf32>
    %131 = arith.divf %127, %130 : vector<8x8xf32>
    %cst_47 = arith.constant 0.000000e+00 : f32
    %132 = vector.broadcast %cst_47 : f32 to vector<8x8xf32>
    %133 = arith.select %13, %131, %132 : vector<8x8xi1>, vector<8x8xf32>
    %134 = vector.extract_strided_slice %9 {offsets = [0, 96], sizes = [8, 32], strides = [1, 1]} : vector<8x128xf32> to vector<8x32xf32>
    %cst_48 = arith.constant dense<0.000000e+00> : vector<8x32xf32>
    %135 = tpu.matmul %133, %134, %cst_48 {dimension_numbers = #tpu.dot_dimension_numbers<[1], [0], [0], [1], [0, 0, 1, 1], [], []>} : vector<8x8xf32>, vector<8x32xf32>, vector<8x32xf32> -> vector<8x32xf32>
    %cst_49 = arith.constant 0.000000e+00 : f32
    %136 = vector.broadcast %cst_49 : f32 to vector<8x32xf32>
    %137 = arith.cmpf ogt, %135, %136 : vector<8x32xf32>
    %138 = math.exp %135 : vector<8x32xf32>
    %cst_50 = arith.constant 1.000000e+00 : f32
    %139 = vector.broadcast %cst_50 : f32 to vector<8x32xf32>
    %140 = arith.subf %138, %139 : vector<8x32xf32>
    %141 = arith.select %137, %135, %140 : vector<8x32xi1>, vector<8x32xf32>
    %142 = tpu.concatenate %45, %77, %109, %141 in 1 : vector<8x32xf32>, vector<8x32xf32>, vector<8x32xf32>, vector<8x32xf32> -> vector<8x128xf32>
    %cst_51 = arith.constant dense<0.000000e+00> : vector<8x32xf32>
    %143 = tpu.matmul %142, %1, %cst_51 {dimension_numbers = #tpu.dot_dimension_numbers<[1], [0], [0], [1], [0, 0, 1, 1], [], []>} : vector<8x128xf32>, vector<128x32xf32>, vector<8x32xf32> -> vector<8x32xf32>
    %144 = vector.broadcast %2 : vector<1x32xf32> to vector<8x32xf32>
    %145 = arith.addf %143, %144 : vector<8x32xf32>
    %146 = arith.addf %145, %7 : vector<8x32xf32>
    %cst_52 = arith.constant dense<0.000000e+00> : vector<8xf32>
    %147 = vector.multi_reduction <add>, %146, %cst_52 [1] : vector<8x32xf32> to vector<8xf32>
    %148 = vector.shape_cast %147 : vector<8xf32> to vector<8x1xf32>
    %cst_53 = arith.constant 3.200000e+01 : f32
    %149 = vector.broadcast %cst_53 : f32 to vector<8x1xf32>
    %150 = arith.divf %148, %149 : vector<8x1xf32>
    %151 = vector.broadcast %150 : vector<8x1xf32> to vector<8x32xf32>
    %152 = arith.subf %146, %151 : vector<8x32xf32>
    %153 = arith.mulf %152, %152 : vector<8x32xf32>
    %cst_54 = arith.constant dense<0.000000e+00> : vector<8xf32>
    %154 = vector.multi_reduction <add>, %153, %cst_54 [1] : vector<8x32xf32> to vector<8xf32>
    %155 = vector.shape_cast %154 : vector<8xf32> to vector<8x1xf32>
    %cst_55 = arith.constant 3.200000e+01 : f32
    %156 = vector.broadcast %cst_55 : f32 to vector<8x1xf32>
    %157 = arith.divf %155, %156 : vector<8x1xf32>
    %cst_56 = arith.constant 9.99999974E-6 : f32
    %158 = vector.broadcast %cst_56 : f32 to vector<8x1xf32>
    %159 = arith.addf %157, %158 : vector<8x1xf32>
    %160 = math.rsqrt %159 : vector<8x1xf32>
    %161 = vector.broadcast %160 : vector<8x1xf32> to vector<8x32xf32>
    %162 = arith.mulf %152, %161 : vector<8x32xf32>
    %c0_57 = arith.constant 0 : index
    %c0_58 = arith.constant 0 : index
    %c0_59 = arith.constant 0 : index
    %163 = vector.load %arg6[%c0_57, %c0_58, %c0_59] : memref<2x8x32xf32, #tpu.memory_space<vmem>>, vector<1x8x32xf32>
    %164 = vector.shape_cast %163 : vector<1x8x32xf32> to vector<8x32xf32>
    %165 = vector.shape_cast %162 : vector<8x32xf32> to vector<1x8x32xf32>
    tpu.vector_store %arg6[%c0_57, %c0_58, %c0_59], %165 {strides = array<i32>} : memref<2x8x32xf32, #tpu.memory_space<vmem>>, vector<1x8x32xf32>,
    %c1 = arith.constant 1 : index
    %c0_60 = arith.constant 0 : index
    %c0_61 = arith.constant 0 : index
    %166 = vector.load %arg1[%c1, %c0_60, %c0_61] : memref<2x8x32xf32, #tpu.memory_space<vmem>>, vector<1x8x32xf32>
    %167 = vector.shape_cast %166 : vector<1x8x32xf32> to vector<8x32xf32>
    %168 = vector.extract_strided_slice %5 {offsets = [8, 0], sizes = [8, 136], strides = [1, 1]} : vector<16x136xf32> to vector<8x136xf32>
    %169 = vector.extract_strided_slice %168 {offsets = [0, 0], sizes = [8, 128], strides = [1, 1]} : vector<8x136xf32> to vector<8x128xf32>
    %c1_62 = arith.constant 1 : index
    %c0_63 = arith.constant 0 : index
    %c0_64 = arith.constant 0 : index
    %170 = vector.load %arg2[%c1_62, %c0_63, %c0_64] : memref<2x8x8xf32, #tpu.memory_space<vmem>>, vector<1x8x8xf32>
    %171 = vector.shape_cast %170 : vector<1x8x8xf32> to vector<8x8xf32>
    %cst_65 = arith.constant 0.000000e+00 : f32
    %172 = vector.broadcast %cst_65 : f32 to vector<8x8xf32>
    %173 = arith.cmpf ogt, %171, %172 : vector<8x8xf32>
    %174 = vector.extract_strided_slice %168 {offsets = [0, 128], sizes = [8, 1], strides = [1, 1]} : vector<8x136xf32> to vector<8x1xf32>
    %175 = vector.extract_strided_slice %168 {offsets = [0, 132], sizes = [8, 1], strides = [1, 1]} : vector<8x136xf32> to vector<8x1xf32>
    %176 = tpu.transpose %175, [1, 0] : vector<8x1xf32> -> vector<1x8xf32>
    %177 = vector.broadcast %174 : vector<8x1xf32> to vector<8x8xf32>
    %178 = vector.broadcast %176 : vector<1x8xf32> to vector<8x8xf32>
    %179 = arith.mulf %177, %178 : vector<8x8xf32>
    %cst_66 = arith.constant 0.000000e+00 : f32
    %180 = vector.broadcast %cst_66 : f32 to vector<8x8xf32>
    %181 = arith.cmpf oge, %179, %180 : vector<8x8xf32>
    %cst_67 = arith.constant 0.00999999977 : f32
    %182 = vector.broadcast %cst_67 : f32 to vector<8x8xf32>
    %183 = arith.mulf %182, %179 : vector<8x8xf32>
    %184 = arith.select %181, %179, %183 : vector<8x8xi1>, vector<8x8xf32>
    %cst_68 = arith.constant -9.000000e+15 : f32
    %185 = vector.broadcast %cst_68 : f32 to vector<8x8xf32>
    %186 = arith.select %173, %184, %185 : vector<8x8xi1>, vector<8x8xf32>
    %cst_69 = arith.constant dense<0xFF800000> : vector<8xf32>
    %187 = vector.multi_reduction <maximumf>, %186, %cst_69 [1] : vector<8x8xf32> to vector<8xf32>
    %188 = vector.shape_cast %187 : vector<8xf32> to vector<8x1xf32>
    %189 = vector.broadcast %188 : vector<8x1xf32> to vector<8x8xf32>
    %190 = arith.subf %186, %189 : vector<8x8xf32>
    %191 = math.exp %190 : vector<8x8xf32>
    %cst_70 = arith.constant dense<0.000000e+00> : vector<8xf32>
    %192 = vector.multi_reduction <add>, %191, %cst_70 [1] : vector<8x8xf32> to vector<8xf32>
    %193 = vector.shape_cast %192 : vector<8xf32> to vector<8x1xf32>
    %194 = vector.broadcast %193 : vector<8x1xf32> to vector<8x8xf32>
    %195 = arith.divf %191, %194 : vector<8x8xf32>
    %cst_71 = arith.constant 0.000000e+00 : f32
    %196 = vector.broadcast %cst_71 : f32 to vector<8x8xf32>
    %197 = arith.select %173, %195, %196 : vector<8x8xi1>, vector<8x8xf32>
    %198 = vector.extract_strided_slice %169 {offsets = [0, 0], sizes = [8, 32], strides = [1, 1]} : vector<8x128xf32> to vector<8x32xf32>
    %cst_72 = arith.constant dense<0.000000e+00> : vector<8x32xf32>
    %199 = tpu.matmul %197, %198, %cst_72 {dimension_numbers = #tpu.dot_dimension_numbers<[1], [0], [0], [1], [0, 0, 1, 1], [], []>} : vector<8x8xf32>, vector<8x32xf32>, vector<8x32xf32> -> vector<8x32xf32>
    %cst_73 = arith.constant 0.000000e+00 : f32
    %200 = vector.broadcast %cst_73 : f32 to vector<8x32xf32>
    %201 = arith.cmpf ogt, %199, %200 : vector<8x32xf32>
    %202 = math.exp %199 : vector<8x32xf32>
    %cst_74 = arith.constant 1.000000e+00 : f32
    %203 = vector.broadcast %cst_74 : f32 to vector<8x32xf32>
    %204 = arith.subf %202, %203 : vector<8x32xf32>
    %205 = arith.select %201, %199, %204 : vector<8x32xi1>, vector<8x32xf32>
    %206 = vector.extract_strided_slice %168 {offsets = [0, 129], sizes = [8, 1], strides = [1, 1]} : vector<8x136xf32> to vector<8x1xf32>
    %207 = vector.extract_strided_slice %168 {offsets = [0, 133], sizes = [8, 1], strides = [1, 1]} : vector<8x136xf32> to vector<8x1xf32>
    %208 = tpu.transpose %207, [1, 0] : vector<8x1xf32> -> vector<1x8xf32>
    %209 = vector.broadcast %206 : vector<8x1xf32> to vector<8x8xf32>
    %210 = vector.broadcast %208 : vector<1x8xf32> to vector<8x8xf32>
    %211 = arith.mulf %209, %210 : vector<8x8xf32>
    %cst_75 = arith.constant 0.000000e+00 : f32
    %212 = vector.broadcast %cst_75 : f32 to vector<8x8xf32>
    %213 = arith.cmpf oge, %211, %212 : vector<8x8xf32>
    %cst_76 = arith.constant 0.00999999977 : f32
    %214 = vector.broadcast %cst_76 : f32 to vector<8x8xf32>
    %215 = arith.mulf %214, %211 : vector<8x8xf32>
    %216 = arith.select %213, %211, %215 : vector<8x8xi1>, vector<8x8xf32>
    %cst_77 = arith.constant -9.000000e+15 : f32
    %217 = vector.broadcast %cst_77 : f32 to vector<8x8xf32>
    %218 = arith.select %173, %216, %217 : vector<8x8xi1>, vector<8x8xf32>
    %cst_78 = arith.constant dense<0xFF800000> : vector<8xf32>
    %219 = vector.multi_reduction <maximumf>, %218, %cst_78 [1] : vector<8x8xf32> to vector<8xf32>
    %220 = vector.shape_cast %219 : vector<8xf32> to vector<8x1xf32>
    %221 = vector.broadcast %220 : vector<8x1xf32> to vector<8x8xf32>
    %222 = arith.subf %218, %221 : vector<8x8xf32>
    %223 = math.exp %222 : vector<8x8xf32>
    %cst_79 = arith.constant dense<0.000000e+00> : vector<8xf32>
    %224 = vector.multi_reduction <add>, %223, %cst_79 [1] : vector<8x8xf32> to vector<8xf32>
    %225 = vector.shape_cast %224 : vector<8xf32> to vector<8x1xf32>
    %226 = vector.broadcast %225 : vector<8x1xf32> to vector<8x8xf32>
    %227 = arith.divf %223, %226 : vector<8x8xf32>
    %cst_80 = arith.constant 0.000000e+00 : f32
    %228 = vector.broadcast %cst_80 : f32 to vector<8x8xf32>
    %229 = arith.select %173, %227, %228 : vector<8x8xi1>, vector<8x8xf32>
    %230 = vector.extract_strided_slice %169 {offsets = [0, 32], sizes = [8, 32], strides = [1, 1]} : vector<8x128xf32> to vector<8x32xf32>
    %cst_81 = arith.constant dense<0.000000e+00> : vector<8x32xf32>
    %231 = tpu.matmul %229, %230, %cst_81 {dimension_numbers = #tpu.dot_dimension_numbers<[1], [0], [0], [1], [0, 0, 1, 1], [], []>} : vector<8x8xf32>, vector<8x32xf32>, vector<8x32xf32> -> vector<8x32xf32>
    %cst_82 = arith.constant 0.000000e+00 : f32
    %232 = vector.broadcast %cst_82 : f32 to vector<8x32xf32>
    %233 = arith.cmpf ogt, %231, %232 : vector<8x32xf32>
    %234 = math.exp %231 : vector<8x32xf32>
    %cst_83 = arith.constant 1.000000e+00 : f32
    %235 = vector.broadcast %cst_83 : f32 to vector<8x32xf32>
    %236 = arith.subf %234, %235 : vector<8x32xf32>
    %237 = arith.select %233, %231, %236 : vector<8x32xi1>, vector<8x32xf32>
    %238 = vector.extract_strided_slice %168 {offsets = [0, 130], sizes = [8, 1], strides = [1, 1]} : vector<8x136xf32> to vector<8x1xf32>
    %239 = vector.extract_strided_slice %168 {offsets = [0, 134], sizes = [8, 1], strides = [1, 1]} : vector<8x136xf32> to vector<8x1xf32>
    %240 = tpu.transpose %239, [1, 0] : vector<8x1xf32> -> vector<1x8xf32>
    %241 = vector.broadcast %238 : vector<8x1xf32> to vector<8x8xf32>
    %242 = vector.broadcast %240 : vector<1x8xf32> to vector<8x8xf32>
    %243 = arith.mulf %241, %242 : vector<8x8xf32>
    %cst_84 = arith.constant 0.000000e+00 : f32
    %244 = vector.broadcast %cst_84 : f32 to vector<8x8xf32>
    %245 = arith.cmpf oge, %243, %244 : vector<8x8xf32>
    %cst_85 = arith.constant 0.00999999977 : f32
    %246 = vector.broadcast %cst_85 : f32 to vector<8x8xf32>
    %247 = arith.mulf %246, %243 : vector<8x8xf32>
    %248 = arith.select %245, %243, %247 : vector<8x8xi1>, vector<8x8xf32>
    %cst_86 = arith.constant -9.000000e+15 : f32
    %249 = vector.broadcast %cst_86 : f32 to vector<8x8xf32>
    %250 = arith.select %173, %248, %249 : vector<8x8xi1>, vector<8x8xf32>
    %cst_87 = arith.constant dense<0xFF800000> : vector<8xf32>
    %251 = vector.multi_reduction <maximumf>, %250, %cst_87 [1] : vector<8x8xf32> to vector<8xf32>
    %252 = vector.shape_cast %251 : vector<8xf32> to vector<8x1xf32>
    %253 = vector.broadcast %252 : vector<8x1xf32> to vector<8x8xf32>
    %254 = arith.subf %250, %253 : vector<8x8xf32>
    %255 = math.exp %254 : vector<8x8xf32>
    %cst_88 = arith.constant dense<0.000000e+00> : vector<8xf32>
    %256 = vector.multi_reduction <add>, %255, %cst_88 [1] : vector<8x8xf32> to vector<8xf32>
    %257 = vector.shape_cast %256 : vector<8xf32> to vector<8x1xf32>
    %258 = vector.broadcast %257 : vector<8x1xf32> to vector<8x8xf32>
    %259 = arith.divf %255, %258 : vector<8x8xf32>
    %cst_89 = arith.constant 0.000000e+00 : f32
    %260 = vector.broadcast %cst_89 : f32 to vector<8x8xf32>
    %261 = arith.select %173, %259, %260 : vector<8x8xi1>, vector<8x8xf32>
    %262 = vector.extract_strided_slice %169 {offsets = [0, 64], sizes = [8, 32], strides = [1, 1]} : vector<8x128xf32> to vector<8x32xf32>
    %cst_90 = arith.constant dense<0.000000e+00> : vector<8x32xf32>
    %263 = tpu.matmul %261, %262, %cst_90 {dimension_numbers = #tpu.dot_dimension_numbers<[1], [0], [0], [1], [0, 0, 1, 1], [], []>} : vector<8x8xf32>, vector<8x32xf32>, vector<8x32xf32> -> vector<8x32xf32>
    %cst_91 = arith.constant 0.000000e+00 : f32
    %264 = vector.broadcast %cst_91 : f32 to vector<8x32xf32>
    %265 = arith.cmpf ogt, %263, %264 : vector<8x32xf32>
    %266 = math.exp %263 : vector<8x32xf32>
    %cst_92 = arith.constant 1.000000e+00 : f32
    %267 = vector.broadcast %cst_92 : f32 to vector<8x32xf32>
    %268 = arith.subf %266, %267 : vector<8x32xf32>
    %269 = arith.select %265, %263, %268 : vector<8x32xi1>, vector<8x32xf32>
    %270 = vector.extract_strided_slice %168 {offsets = [0, 131], sizes = [8, 1], strides = [1, 1]} : vector<8x136xf32> to vector<8x1xf32>
    %271 = vector.extract_strided_slice %168 {offsets = [0, 135], sizes = [8, 1], strides = [1, 1]} : vector<8x136xf32> to vector<8x1xf32>
    %272 = tpu.transpose %271, [1, 0] : vector<8x1xf32> -> vector<1x8xf32>
    %273 = vector.broadcast %270 : vector<8x1xf32> to vector<8x8xf32>
    %274 = vector.broadcast %272 : vector<1x8xf32> to vector<8x8xf32>
    %275 = arith.mulf %273, %274 : vector<8x8xf32>
    %cst_93 = arith.constant 0.000000e+00 : f32
    %276 = vector.broadcast %cst_93 : f32 to vector<8x8xf32>
    %277 = arith.cmpf oge, %275, %276 : vector<8x8xf32>
    %cst_94 = arith.constant 0.00999999977 : f32
    %278 = vector.broadcast %cst_94 : f32 to vector<8x8xf32>
    %279 = arith.mulf %278, %275 : vector<8x8xf32>
    %280 = arith.select %277, %275, %279 : vector<8x8xi1>, vector<8x8xf32>
    %cst_95 = arith.constant -9.000000e+15 : f32
    %281 = vector.broadcast %cst_95 : f32 to vector<8x8xf32>
    %282 = arith.select %173, %280, %281 : vector<8x8xi1>, vector<8x8xf32>
    %cst_96 = arith.constant dense<0xFF800000> : vector<8xf32>
    %283 = vector.multi_reduction <maximumf>, %282, %cst_96 [1] : vector<8x8xf32> to vector<8xf32>
    %284 = vector.shape_cast %283 : vector<8xf32> to vector<8x1xf32>
    %285 = vector.broadcast %284 : vector<8x1xf32> to vector<8x8xf32>
    %286 = arith.subf %282, %285 : vector<8x8xf32>
    %287 = math.exp %286 : vector<8x8xf32>
    %cst_97 = arith.constant dense<0.000000e+00> : vector<8xf32>
    %288 = vector.multi_reduction <add>, %287, %cst_97 [1] : vector<8x8xf32> to vector<8xf32>
    %289 = vector.shape_cast %288 : vector<8xf32> to vector<8x1xf32>
    %290 = vector.broadcast %289 : vector<8x1xf32> to vector<8x8xf32>
    %291 = arith.divf %287, %290 : vector<8x8xf32>
    %cst_98 = arith.constant 0.000000e+00 : f32
    %292 = vector.broadcast %cst_98 : f32 to vector<8x8xf32>
    %293 = arith.select %173, %291, %292 : vector<8x8xi1>, vector<8x8xf32>
    %294 = vector.extract_strided_slice %169 {offsets = [0, 96], sizes = [8, 32], strides = [1, 1]} : vector<8x128xf32> to vector<8x32xf32>
    %cst_99 = arith.constant dense<0.000000e+00> : vector<8x32xf32>
    %295 = tpu.matmul %293, %294, %cst_99 {dimension_numbers = #tpu.dot_dimension_numbers<[1], [0], [0], [1], [0, 0, 1, 1], [], []>} : vector<8x8xf32>, vector<8x32xf32>, vector<8x32xf32> -> vector<8x32xf32>
    %cst_100 = arith.constant 0.000000e+00 : f32
    %296 = vector.broadcast %cst_100 : f32 to vector<8x32xf32>
    %297 = arith.cmpf ogt, %295, %296 : vector<8x32xf32>
    %298 = math.exp %295 : vector<8x32xf32>
    %cst_101 = arith.constant 1.000000e+00 : f32
    %299 = vector.broadcast %cst_101 : f32 to vector<8x32xf32>
    %300 = arith.subf %298, %299 : vector<8x32xf32>
    %301 = arith.select %297, %295, %300 : vector<8x32xi1>, vector<8x32xf32>
    %302 = tpu.concatenate %205, %237, %269, %301 in 1 : vector<8x32xf32>, vector<8x32xf32>, vector<8x32xf32>, vector<8x32xf32> -> vector<8x128xf32>
    %cst_102 = arith.constant dense<0.000000e+00> : vector<8x32xf32>
    %303 = tpu.matmul %302, %1, %cst_102 {dimension_numbers = #tpu.dot_dimension_numbers<[1], [0], [0], [1], [0, 0, 1, 1], [], []>} : vector<8x128xf32>, vector<128x32xf32>, vector<8x32xf32> -> vector<8x32xf32>
    %304 = vector.broadcast %2 : vector<1x32xf32> to vector<8x32xf32>
    %305 = arith.addf %303, %304 : vector<8x32xf32>
    %306 = arith.addf %305, %167 : vector<8x32xf32>
    %cst_103 = arith.constant dense<0.000000e+00> : vector<8xf32>
    %307 = vector.multi_reduction <add>, %306, %cst_103 [1] : vector<8x32xf32> to vector<8xf32>
    %308 = vector.shape_cast %307 : vector<8xf32> to vector<8x1xf32>
    %cst_104 = arith.constant 3.200000e+01 : f32
    %309 = vector.broadcast %cst_104 : f32 to vector<8x1xf32>
    %310 = arith.divf %308, %309 : vector<8x1xf32>
    %311 = vector.broadcast %310 : vector<8x1xf32> to vector<8x32xf32>
    %312 = arith.subf %306, %311 : vector<8x32xf32>
    %313 = arith.mulf %312, %312 : vector<8x32xf32>
    %cst_105 = arith.constant dense<0.000000e+00> : vector<8xf32>
    %314 = vector.multi_reduction <add>, %313, %cst_105 [1] : vector<8x32xf32> to vector<8xf32>
    %315 = vector.shape_cast %314 : vector<8xf32> to vector<8x1xf32>
    %cst_106 = arith.constant 3.200000e+01 : f32
    %316 = vector.broadcast %cst_106 : f32 to vector<8x1xf32>
    %317 = arith.divf %315, %316 : vector<8x1xf32>
    %cst_107 = arith.constant 9.99999974E-6 : f32
    %318 = vector.broadcast %cst_107 : f32 to vector<8x1xf32>
    %319 = arith.addf %317, %318 : vector<8x1xf32>
    %320 = math.rsqrt %319 : vector<8x1xf32>
    %321 = vector.broadcast %320 : vector<8x1xf32> to vector<8x32xf32>
    %322 = arith.mulf %312, %321 : vector<8x32xf32>
    %c1_108 = arith.constant 1 : index
    %c0_109 = arith.constant 0 : index
    %c0_110 = arith.constant 0 : index
    %323 = vector.load %arg6[%c1_108, %c0_109, %c0_110] : memref<2x8x32xf32, #tpu.memory_space<vmem>>, vector<1x8x32xf32>
    %324 = vector.shape_cast %323 : vector<1x8x32xf32> to vector<8x32xf32>
    %325 = vector.shape_cast %322 : vector<8x32xf32> to vector<1x8x32xf32>
    tpu.vector_store %arg6[%c1_108, %c0_109, %c0_110], %325 {strides = array<i32>} : memref<2x8x32xf32, #tpu.memory_space<vmem>>, vector<1x8x32xf32>,
    return
  }
  func.func @transform_0(%arg0: i32) -> (i32, i32, i32) {
    %c0_i32 = arith.constant 0 : i32
    %c0_i32_0 = arith.constant 0 : i32
    %c0_i32_1 = arith.constant 0 : i32
    return %arg0, %c0_i32, %c0_i32_0 : i32, i32, i32
  }
  func.func @transform_1(%arg0: i32) -> (i32, i32, i32) {
    %c0_i32 = arith.constant 0 : i32
    %c0_i32_0 = arith.constant 0 : i32
    %c0_i32_1 = arith.constant 0 : i32
    return %arg0, %c0_i32, %c0_i32_0 : i32, i32, i32
  }
  func.func @transform_2(%arg0: i32) -> (i32, i32) {
    %c0_i32 = arith.constant 0 : i32
    %c0_i32_0 = arith.constant 0 : i32
    %c0_i32_1 = arith.constant 0 : i32
    return %c0_i32, %c0_i32_0 : i32, i32
  }
  func.func @transform_3(%arg0: i32) -> (i32, i32) {
    %c0_i32 = arith.constant 0 : i32
    %c0_i32_0 = arith.constant 0 : i32
    %c0_i32_1 = arith.constant 0 : i32
    return %c0_i32, %c0_i32_0 : i32, i32
  }
  func.func @transform_4(%arg0: i32) -> (i32, i32) {
    %c0_i32 = arith.constant 0 : i32
    %c0_i32_0 = arith.constant 0 : i32
    %c0_i32_1 = arith.constant 0 : i32
    return %c0_i32, %c0_i32_0 : i32, i32
  }
  func.func @transform_5(%arg0: i32) -> (i32, i32, i32) {
    %c0_i32 = arith.constant 0 : i32
    %c0_i32_0 = arith.constant 0 : i32
    %c0_i32_1 = arith.constant 0 : i32
    return %arg0, %c0_i32, %c0_i32_0 : i32, i32, i32
  }
}

</mosaic_0001>

<llo_original>
// kernel: tpu_custom_call.1
$region0: #{tpu_custom_call.1}
  #allocation0 [shape = 'u32[]', space=smem, size = 0x4, offset = 0x4, fixed_abs, tag = 'smem constant byte address 0x4 - core index']
  #allocation1 [shape = 'u32[72,128]{1,0:T(1,128)}', space=vmem, size = 0x9000, scoped, tag = 'internal scratch']
  %s0 = inlined_call_operand.vmem [shape: f32[2,8,32], index: 0, kind: input, shape index: {}]
  %s1 = inlined_call_operand.vmem [shape: f32[2,8,8], index: 1, kind: input, shape index: {}]
  %s2 = inlined_call_operand.vmem [shape: f32[32,136], index: 2, kind: input, shape index: {}]
  %s3 = inlined_call_operand.vmem [shape: f32[128,32], index: 3, kind: input, shape index: {}]
  %s4 = inlined_call_operand.vmem [shape: f32[1,32], index: 4, kind: input, shape index: {}]
  %s5 = inlined_call_operand.hbm [shape: f32[2,8,32], index: 5, kind: output, shape index: {}]
  %s6 = sld [smem:[#allocation0]]
  $region30: #{tpu_custom_call.1} parent=0
    _
  %s8 = ssub.s32 1, %s6
  %s9 = scalar_select 0, %s8, %s6
  $region1: #{tpu_custom_call.1} parent=0
    #allocation2 [shape = 'u8[8192]{0}', space=vmem, size = 0x2000, scoped, tag = 'output window, operand 0, single buffered']
    #allocation3 [shape = 's32[1]{0}', space=sflag, size = 0x4, scoped, tag = 'scoped memory for tpu_custom_call.1']
    %10 = vsyncpa [#allocation3], 0
    // Predicated region
    $region2: #{tpu_custom_call.1} parent=1 // pred_check
      _
    $region3: #{tpu_custom_call.1} parent=1 // pred_check_branch
      %12 = sbr.rel (0) target = $region5
    $region4: #{tpu_custom_call.1} parent=1 // pred_region
      _
    $region5: #{tpu_custom_call.1} parent=1 // pred_fallthru
      _
    // Predicated region
    $region6: #{tpu_custom_call.1} parent=1 // pred_check
      _
    $region7: #{tpu_custom_call.1} parent=1 // pred_check_branch
      %14 = sbr.rel (0) target = $region9
    $region8: #{tpu_custom_call.1} parent=1 // pred_region
      _
    $region9: #{tpu_custom_call.1} parent=1 // pred_fallthru
      _
    // Predicated region
    $region10: #{tpu_custom_call.1} parent=1 // pred_check
      _
    $region11: #{tpu_custom_call.1} parent=1 // pred_check_branch
      %16 = sbr.rel (0) target = $region13
    $region12: #{tpu_custom_call.1} parent=1 // pred_region
      _
    $region13: #{tpu_custom_call.1} parent=1 // pred_fallthru
      _
    // Predicated region
    $region14: #{tpu_custom_call.1} parent=1 // pred_check
      _
    $region15: #{tpu_custom_call.1} parent=1 // pred_check_branch
      %18 = sbr.rel (0) target = $region17
    $region16: #{tpu_custom_call.1} parent=1 // pred_region
      _
    $region17: #{tpu_custom_call.1} parent=1 // pred_fallthru
      _
    // Predicated region
    $region18: #{tpu_custom_call.1} parent=1 // pred_check
      _
    $region19: #{tpu_custom_call.1} parent=1 // pred_check_branch
      %20 = sbr.rel (0) target = $region21
    $region20: #{tpu_custom_call.1} parent=1 // pred_region
      _
    $region21: #{tpu_custom_call.1} parent=1 // pred_fallthru
      _
    %v21 = vld [vmem:[%s2] sm:$0xff]
    %v22 = vld [vmem:[%s2 + $0x8] sm:$0xff]
    %v23 = vld [vmem:[%s2 + $0x10] sm:$0xff]
    %v24 = vld [vmem:[%s2 + $0x18] sm:$0xff]
    %v25 = vld [vmem:[%s2 + $0x20] sm:$0xff]
    %v26 = vld [vmem:[%s2 + $0x28] sm:$0xff]
    %v27 = vld [vmem:[%s2 + $0x30] sm:$0xff]
    %v28 = vld [vmem:[%s2 + $0x38] sm:$0xff]
    %v29 = vld [vmem:[%s3] sm:$0xff]
    %v30 = vld [vmem:[%s3 + $0x8] sm:$0xff]
    %v31 = vld [vmem:[%s3 + $0x10] sm:$0xff]
    %v32 = vld [vmem:[%s3 + $0x18] sm:$0xff]
    %v33 = vld [vmem:[%s3 + $0x20] sm:$0xff]
    %v34 = vld [vmem:[%s3 + $0x28] sm:$0xff]
    %v35 = vld [vmem:[%s3 + $0x30] sm:$0xff]
    %v36 = vld [vmem:[%s3 + $0x38] sm:$0xff]
    %v37 = vld [vmem:[%s3 + $0x40] sm:$0xff]
    %v38 = vld [vmem:[%s3 + $0x48] sm:$0xff]
    %v39 = vld [vmem:[%s3 + $0x50] sm:$0xff]
    %v40 = vld [vmem:[%s3 + $0x58] sm:$0xff]
    %v41 = vld [vmem:[%s3 + $0x60] sm:$0xff]
    %v42 = vld [vmem:[%s3 + $0x68] sm:$0xff]
    %v43 = vld [vmem:[%s3 + $0x70] sm:$0xff]
    %v44 = vld [vmem:[%s3 + $0x78] sm:$0xff]
    %v45 = vld [vmem:[%s4] sm:$0x1]
    %v46 = vld [vmem:[%s0] sm:$0xff]
    %v47 = vld [vmem:[%s0 + $0x8] sm:$0xff]
    %vm48 = vcmask 261120
    %v50 = vsel %vm48, %v46, 0
    %v53 = vsel %vm48, %v47, 0
    %55 = vmatpush.msra.mxu0 0.0
    %56 = vmatpush.msra.mxu0 0.0
    %57 = vmatpush.msra.mxu0 0.0
    %58 = vmatpush.msra.mxu0 0.0
    %59 = vmatpush.msra.mxu0 0.0
    %60 = vmatpush.msra.mxu0 0.0
    %61 = vmatpush.msra.mxu0 0.0
    %62 = vmatpush.msra.mxu0 0.0
    %63 = vmatpush.msra.mxu0 0.0
    %64 = vmatpush.msra.mxu0 0.0
    %65 = vmatpush.msra.mxu0 0.0
    %66 = vmatpush.msra.mxu0 0.0
    %67 = vmatpush.msra.mxu0 %v27
    %68 = vmatpush.msra.mxu0 %v25
    %69 = vmatpush.msra.mxu0 %v23
    %70 = vmatpush.msra.mxu0 %v21
    %71 = vmatmul.f32.gmra.mxu0 %v50
    %v72 = vpop.f32.mrf.mxu0
    %v73 = vadd.f32 0.0, %v72
    %74 = vmatmul.f32.gmra.mxu0 %v53
    %v75 = vpop.f32.mrf.mxu0
    %v76 = vadd.f32 0.0, %v75
    %77 = vdwg.mxu0
    %78 = vmatpush.msra.mxu0 0.0
    %79 = vmatpush.msra.mxu0 0.0
    %80 = vmatpush.msra.mxu0 0.0
    %81 = vmatpush.msra.mxu0 0.0
    %82 = vmatpush.msra.mxu0 0.0
    %83 = vmatpush.msra.mxu0 0.0
    %84 = vmatpush.msra.mxu0 0.0
    %85 = vmatpush.msra.mxu0 0.0
    %86 = vmatpush.msra.mxu0 0.0
    %87 = vmatpush.msra.mxu0 0.0
    %88 = vmatpush.msra.mxu0 0.0
    %89 = vmatpush.msra.mxu0 0.0
    %90 = vmatpush.msra.mxu0 %v28
    %91 = vmatpush.msra.mxu0 %v26
    %92 = vmatpush.msra.mxu0 %v24
    %93 = vmatpush.msra.mxu0 %v22
    %94 = vmatmul.f32.gmra.mxu0 %v50
    %v95 = vpop.f32.mrf.mxu0
    %v96 = vadd.f32 0.0, %v95
    %97 = vmatmul.f32.gmra.mxu0 %v53
    %v98 = vpop.f32.mrf.mxu0
    %v99 = vadd.f32 0.0, %v98
    %100 = vdwg.mxu0
    %v101 = vld [vmem:[%s0] sm:$0xff]
    %v102 = vld [vmem:[%s1] sm:$0xff]
    %vm103 = vcmp.gt.f32.partialorder %v102, 0.0
    %105 = vrot.lane.b32.xlu0 %v96, 124
    %v106 = vpop.permute.xlu0 %105
    %108 = vxpose.xlu0.b32.start [1/16] %v106, 128
    %109 = vxpose.xlu0.b32.cont [2/16] 0.0, 128
    %110 = vxpose.xlu0.b32.cont [3/16] 0.0, 128
    %111 = vxpose.xlu0.b32.cont [4/16] 0.0, 128
    %112 = vxpose.xlu0.b32.cont [5/16] 0.0, 128
    %113 = vxpose.xlu0.b32.cont [6/16] 0.0, 128
    %114 = vxpose.xlu0.b32.cont [7/16] 0.0, 128
    %115 = vxpose.xlu0.b32.cont [8/16] 0.0, 128
    %116 = vxpose.xlu0.b32.cont [9/16] 0.0, 128
    %117 = vxpose.xlu0.b32.cont [10/16] 0.0, 128
    %118 = vxpose.xlu0.b32.cont [11/16] 0.0, 128
    %119 = vxpose.xlu0.b32.cont [12/16] 0.0, 128
    %120 = vxpose.xlu0.b32.cont [13/16] 0.0, 128
    %121 = vxpose.xlu0.b32.cont [14/16] 0.0, 128
    %122 = vxpose.xlu0.b32.cont [15/16] 0.0, 128
    %123 = vxpose.xlu0.b32.end [16/16] 0.0, 128
    %v124 = vpop.trf.xlu0
    %v125 = vpop.trf.xlu0
    %v126 = vpop.trf.xlu0
    %v127 = vpop.trf.xlu0
    %v128 = vpop.trf.xlu0
    %v129 = vpop.trf.xlu0
    %v130 = vpop.trf.xlu0
    %v131 = vpop.trf.xlu0
    %v132 = vpop.trf.xlu0
    %v133 = vpop.trf.xlu0
    %v134 = vpop.trf.xlu0
    %v135 = vpop.trf.xlu0
    %v136 = vpop.trf.xlu0
    %v137 = vpop.trf.xlu0
    %v138 = vpop.trf.xlu0
    %v139 = vpop.trf.xlu0
    %140 = vset.pattern.permute.xlu0 0
    %141 = vperm.xlu0 %140, %v96
    %v142 = vpop.permute.xlu0 %141
    %v144 = vperm.slane %v124, 0
    %v145 = vmul.f32 %v142, %v144
    %vm146 = vcmp.ge.f32.partialorder %v145, 0.0
    %v147 = vmul.f32 %v145, 0.01
    %v148 = vsel %vm146, %v145, %v147
    %v149 = vsel %vm103, %v148, -9e+15
    %vm150 = vcmask 64512
    %v151 = vsel %vm150, %v149, -inf
    %152 = vmax.xlane.f32.xlu0 %v151
    %v153 = vpop.xlane.xlu0 %152
    %v154 = vsub.f32 %v149, %v153
    %v155 = vmul.f32 %v154, 1.442695
    %v156 = vpow.pop %v155
    %v157 = vsel %vm150, %v156, 0.0
    %158 = vadd.xlane.f32.xlu0 %v157
    %v159 = vpop.xlane.xlu0 %158
    %v160 = vrcp.pop %v159
    %v161 = vmul.f32 %v159, %v160
    %v162 = vsub.f32 1.0, %v161
    %v163 = vmul.f32 %v160, %v162
    %v164 = vadd.f32 %v160, %v163
    %vm165 = vweird.f32 %v159
    %vm166 = vweird.f32 %v160
    %vm167 = vmor %vm165, %vm166
    %v168 = vsel %vm167, %v160, %v164
    %v169 = vand.u32 2147483647, %v159
    %vm170 = vcmp.eq.f32.partialorder %v169, 8.507059e+37
    %v171 = vand.u32 %v159, 2147483648
    %v172 = vor.u32 1.1754944e-38, %v171
    %v173 = vsel %vm170, %v172, %v168
    %v174 = vmul.f32 %v156, %v173
    %v175 = vsel %vm103, %v174, 0.0
    %v177 = vsel %vm150, %v175, 0
    %179 = vmatpush.msra.mxu0 0.0
    %180 = vmatpush.msra.mxu0 0.0
    %181 = vmatpush.msra.mxu0 0.0
    %182 = vmatpush.msra.mxu0 0.0
    %183 = vmatpush.msra.mxu0 0.0
    %184 = vmatpush.msra.mxu0 0.0
    %185 = vmatpush.msra.mxu0 0.0
    %186 = vmatpush.msra.mxu0 0.0
    %187 = vmatpush.msra.mxu0 0.0
    %188 = vmatpush.msra.mxu0 0.0
    %189 = vmatpush.msra.mxu0 0.0
    %190 = vmatpush.msra.mxu0 0.0
    %191 = vmatpush.msra.mxu0 0.0
    %192 = vmatpush.msra.mxu0 0.0
    %193 = vmatpush.msra.mxu0 0.0
    %194 = vmatpush.msra.mxu0 %v73
    %195 = vmatmul.f32.gmra.mxu0 %v177
    %v196 = vpop.f32.mrf.mxu0
    %v197 = vadd.f32 0.0, %v196
    %198 = vdwg.mxu0
    %vm199 = vcmp.gt.f32.partialorder %v197, 0.0
    %v200 = vmul.f32 %v197, 1.442695
    %v201 = vpow.pop %v200
    %v202 = vsub.f32 %v201, 1.0
    %v203 = vsel %vm199, %v197, %v202
    %204 = vrot.lane.b32.xlu0 %v96, 123
    %v205 = vpop.permute.xlu0 %204
    %207 = vxpose.xlu0.b32.start [1/16] %v205, 128
    %208 = vxpose.xlu0.b32.cont [2/16] 0.0, 128
    %209 = vxpose.xlu0.b32.cont [3/16] 0.0, 128
    %210 = vxpose.xlu0.b32.cont [4/16] 0.0, 128
    %211 = vxpose.xlu0.b32.cont [5/16] 0.0, 128
    %212 = vxpose.xlu0.b32.cont [6/16] 0.0, 128
    %213 = vxpose.xlu0.b32.cont [7/16] 0.0, 128
    %214 = vxpose.xlu0.b32.cont [8/16] 0.0, 128
    %215 = vxpose.xlu0.b32.cont [9/16] 0.0, 128
    %216 = vxpose.xlu0.b32.cont [10/16] 0.0, 128
    %217 = vxpose.xlu0.b32.cont [11/16] 0.0, 128
    %218 = vxpose.xlu0.b32.cont [12/16] 0.0, 128
    %219 = vxpose.xlu0.b32.cont [13/16] 0.0, 128
    %220 = vxpose.xlu0.b32.cont [14/16] 0.0, 128
    %221 = vxpose.xlu0.b32.cont [15/16] 0.0, 128
    %222 = vxpose.xlu0.b32.end [16/16] 0.0, 128
    %v223 = vpop.trf.xlu0
    %v224 = vpop.trf.xlu0
    %v225 = vpop.trf.xlu0
    %v226 = vpop.trf.xlu0
    %v227 = vpop.trf.xlu0
    %v228 = vpop.trf.xlu0
    %v229 = vpop.trf.xlu0
    %v230 = vpop.trf.xlu0
    %v231 = vpop.trf.xlu0
    %v232 = vpop.trf.xlu0
    %v233 = vpop.trf.xlu0
    %v234 = vpop.trf.xlu0
    %v235 = vpop.trf.xlu0
    %v236 = vpop.trf.xlu0
    %v237 = vpop.trf.xlu0
    %v238 = vpop.trf.xlu0
    %239 = vset.pattern.permute.xlu0 1
    %240 = vperm.xlu0 %239, %v96
    %v241 = vpop.permute.xlu0 %240
    %v243 = vperm.slane %v223, 0
    %v244 = vmul.f32 %v241, %v243
    %vm245 = vcmp.ge.f32.partialorder %v244, 0.0
    %v246 = vmul.f32 %v244, 0.01
    %v247 = vsel %vm245, %v244, %v246
    %v248 = vsel %vm103, %v247, -9e+15
    %v249 = vsel %vm150, %v248, -inf
    %250 = vmax.xlane.f32.xlu0 %v249
    %v251 = vpop.xlane.xlu0 %250
    %v252 = vsub.f32 %v248, %v251
    %v253 = vmul.f32 %v252, 1.442695
    %v254 = vpow.pop %v253
    %v255 = vsel %vm150, %v254, 0.0
    %256 = vadd.xlane.f32.xlu0 %v255
    %v257 = vpop.xlane.xlu0 %256
    %v258 = vrcp.pop %v257
    %v259 = vmul.f32 %v257, %v258
    %v260 = vsub.f32 1.0, %v259
    %v261 = vmul.f32 %v258, %v260
    %v262 = vadd.f32 %v258, %v261
    %vm263 = vweird.f32 %v257
    %vm264 = vweird.f32 %v258
    %vm265 = vmor %vm263, %vm264
    %v266 = vsel %vm265, %v258, %v262
    %v267 = vand.u32 2147483647, %v257
    %vm268 = vcmp.eq.f32.partialorder %v267, 8.507059e+37
    %v269 = vand.u32 %v257, 2147483648
    %v270 = vor.u32 1.1754944e-38, %v269
    %v271 = vsel %vm268, %v270, %v266
    %v272 = vmul.f32 %v254, %v271
    %v273 = vsel %vm103, %v272, 0.0
    %275 = vrot.lane.b32.xlu0 %v73, 96
    %v276 = vpop.permute.xlu0 %275
    %v279 = vsel %vm150, %v273, 0
    %281 = vmatpush.msra.mxu0 0.0
    %282 = vmatpush.msra.mxu0 0.0
    %283 = vmatpush.msra.mxu0 0.0
    %284 = vmatpush.msra.mxu0 0.0
    %285 = vmatpush.msra.mxu0 0.0
    %286 = vmatpush.msra.mxu0 0.0
    %287 = vmatpush.msra.mxu0 0.0
    %288 = vmatpush.msra.mxu0 0.0
    %289 = vmatpush.msra.mxu0 0.0
    %290 = vmatpush.msra.mxu0 0.0
    %291 = vmatpush.msra.mxu0 0.0
    %292 = vmatpush.msra.mxu0 0.0
    %293 = vmatpush.msra.mxu0 0.0
    %294 = vmatpush.msra.mxu0 0.0
    %295 = vmatpush.msra.mxu0 0.0
    %296 = vmatpush.msra.mxu0 %v276
    %297 = vmatmul.f32.gmra.mxu0 %v279
    %v298 = vpop.f32.mrf.mxu0
    %v299 = vadd.f32 0.0, %v298
    %300 = vdwg.mxu0
    %vm301 = vcmp.gt.f32.partialorder %v299, 0.0
    %v302 = vmul.f32 %v299, 1.442695
    %v303 = vpow.pop %v302
    %v304 = vsub.f32 %v303, 1.0
    %v305 = vsel %vm301, %v299, %v304
    %306 = vrot.lane.b32.xlu0 %v96, 122
    %v307 = vpop.permute.xlu0 %306
    %309 = vxpose.xlu0.b32.start [1/16] %v307, 128
    %310 = vxpose.xlu0.b32.cont [2/16] 0.0, 128
    %311 = vxpose.xlu0.b32.cont [3/16] 0.0, 128
    %312 = vxpose.xlu0.b32.cont [4/16] 0.0, 128
    %313 = vxpose.xlu0.b32.cont [5/16] 0.0, 128
    %314 = vxpose.xlu0.b32.cont [6/16] 0.0, 128
    %315 = vxpose.xlu0.b32.cont [7/16] 0.0, 128
    %316 = vxpose.xlu0.b32.cont [8/16] 0.0, 128
    %317 = vxpose.xlu0.b32.cont [9/16] 0.0, 128
    %318 = vxpose.xlu0.b32.cont [10/16] 0.0, 128
    %319 = vxpose.xlu0.b32.cont [11/16] 0.0, 128
    %320 = vxpose.xlu0.b32.cont [12/16] 0.0, 128
    %321 = vxpose.xlu0.b32.cont [13/16] 0.0, 128
    %322 = vxpose.xlu0.b32.cont [14/16] 0.0, 128
    %323 = vxpose.xlu0.b32.cont [15/16] 0.0, 128
    %324 = vxpose.xlu0.b32.end [16/16] 0.0, 128
    %v325 = vpop.trf.xlu0
    %v326 = vpop.trf.xlu0
    %v327 = vpop.trf.xlu0
    %v328 = vpop.trf.xlu0
    %v329 = vpop.trf.xlu0
    %v330 = vpop.trf.xlu0
    %v331 = vpop.trf.xlu0
    %v332 = vpop.trf.xlu0
    %v333 = vpop.trf.xlu0
    %v334 = vpop.trf.xlu0
    %v335 = vpop.trf.xlu0
    %v336 = vpop.trf.xlu0
    %v337 = vpop.trf.xlu0
    %v338 = vpop.trf.xlu0
    %v339 = vpop.trf.xlu0
    %v340 = vpop.trf.xlu0
    %341 = vset.pattern.permute.xlu0 2
    %342 = vperm.xlu0 %341, %v96
    %v343 = vpop.permute.xlu0 %342
    %v345 = vperm.slane %v325, 0
    %v346 = vmul.f32 %v343, %v345
    %vm347 = vcmp.ge.f32.partialorder %v346, 0.0
    %v348 = vmul.f32 %v346, 0.01
    %v349 = vsel %vm347, %v346, %v348
    %v350 = vsel %vm103, %v349, -9e+15
    %v351 = vsel %vm150, %v350, -inf
    %352 = vmax.xlane.f32.xlu0 %v351
    %v353 = vpop.xlane.xlu0 %352
    %v354 = vsub.f32 %v350, %v353
    %v355 = vmul.f32 %v354, 1.442695
    %v356 = vpow.pop %v355
    %v357 = vsel %vm150, %v356, 0.0
    %358 = vadd.xlane.f32.xlu0 %v357
    %v359 = vpop.xlane.xlu0 %358
    %v360 = vrcp.pop %v359
    %v361 = vmul.f32 %v359, %v360
    %v362 = vsub.f32 1.0, %v361
    %v363 = vmul.f32 %v360, %v362
    %v364 = vadd.f32 %v360, %v363
    %vm365 = vweird.f32 %v359
    %vm366 = vweird.f32 %v360
    %vm367 = vmor %vm365, %vm366
    %v368 = vsel %vm367, %v360, %v364
    %v369 = vand.u32 2147483647, %v359
    %vm370 = vcmp.eq.f32.partialorder %v369, 8.507059e+37
    %v371 = vand.u32 %v359, 2147483648
    %v372 = vor.u32 1.1754944e-38, %v371
    %v373 = vsel %vm370, %v372, %v368
    %v374 = vmul.f32 %v356, %v373
    %v375 = vsel %vm103, %v374, 0.0
    %376 = vrot.lane.b32.xlu0 %v73, 64
    %v377 = vpop.permute.xlu0 %376
    %v380 = vsel %vm150, %v375, 0
    %382 = vmatpush.msra.mxu0 0.0
    %383 = vmatpush.msra.mxu0 0.0
    %384 = vmatpush.msra.mxu0 0.0
    %385 = vmatpush.msra.mxu0 0.0
    %386 = vmatpush.msra.mxu0 0.0
    %387 = vmatpush.msra.mxu0 0.0
    %388 = vmatpush.msra.mxu0 0.0
    %389 = vmatpush.msra.mxu0 0.0
    %390 = vmatpush.msra.mxu0 0.0
    %391 = vmatpush.msra.mxu0 0.0
    %392 = vmatpush.msra.mxu0 0.0
    %393 = vmatpush.msra.mxu0 0.0
    %394 = vmatpush.msra.mxu0 0.0
    %395 = vmatpush.msra.mxu0 0.0
    %396 = vmatpush.msra.mxu0 0.0
    %397 = vmatpush.msra.mxu0 %v377
    %398 = vmatmul.f32.gmra.mxu0 %v380
    %v399 = vpop.f32.mrf.mxu0
    %v400 = vadd.f32 0.0, %v399
    %401 = vdwg.mxu0
    %vm402 = vcmp.gt.f32.partialorder %v400, 0.0
    %v403 = vmul.f32 %v400, 1.442695
    %v404 = vpow.pop %v403
    %v405 = vsub.f32 %v404, 1.0
    %v406 = vsel %vm402, %v400, %v405
    %407 = vrot.lane.b32.xlu0 %v96, 121
    %v408 = vpop.permute.xlu0 %407
    %410 = vxpose.xlu0.b32.start [1/16] %v408, 128
    %411 = vxpose.xlu0.b32.cont [2/16] 0.0, 128
    %412 = vxpose.xlu0.b32.cont [3/16] 0.0, 128
    %413 = vxpose.xlu0.b32.cont [4/16] 0.0, 128
    %414 = vxpose.xlu0.b32.cont [5/16] 0.0, 128
    %415 = vxpose.xlu0.b32.cont [6/16] 0.0, 128
    %416 = vxpose.xlu0.b32.cont [7/16] 0.0, 128
    %417 = vxpose.xlu0.b32.cont [8/16] 0.0, 128
    %418 = vxpose.xlu0.b32.cont [9/16] 0.0, 128
    %419 = vxpose.xlu0.b32.cont [10/16] 0.0, 128
    %420 = vxpose.xlu0.b32.cont [11/16] 0.0, 128
    %421 = vxpose.xlu0.b32.cont [12/16] 0.0, 128
    %422 = vxpose.xlu0.b32.cont [13/16] 0.0, 128
    %423 = vxpose.xlu0.b32.cont [14/16] 0.0, 128
    %424 = vxpose.xlu0.b32.cont [15/16] 0.0, 128
    %425 = vxpose.xlu0.b32.end [16/16] 0.0, 128
    %v426 = vpop.trf.xlu0
    %v427 = vpop.trf.xlu0
    %v428 = vpop.trf.xlu0
    %v429 = vpop.trf.xlu0
    %v430 = vpop.trf.xlu0
    %v431 = vpop.trf.xlu0
    %v432 = vpop.trf.xlu0
    %v433 = vpop.trf.xlu0
    %v434 = vpop.trf.xlu0
    %v435 = vpop.trf.xlu0
    %v436 = vpop.trf.xlu0
    %v437 = vpop.trf.xlu0
    %v438 = vpop.trf.xlu0
    %v439 = vpop.trf.xlu0
    %v440 = vpop.trf.xlu0
    %v441 = vpop.trf.xlu0
    %442 = vset.pattern.permute.xlu0 3
    %443 = vperm.xlu0 %442, %v96
    %v444 = vpop.permute.xlu0 %443
    %v446 = vperm.slane %v426, 0
    %v447 = vmul.f32 %v444, %v446
    %vm448 = vcmp.ge.f32.partialorder %v447, 0.0
    %v449 = vmul.f32 %v447, 0.01
    %v450 = vsel %vm448, %v447, %v449
    %v451 = vsel %vm103, %v450, -9e+15
    %v452 = vsel %vm150, %v451, -inf
    %453 = vmax.xlane.f32.xlu0 %v452
    %v454 = vpop.xlane.xlu0 %453
    %v455 = vsub.f32 %v451, %v454
    %v456 = vmul.f32 %v455, 1.442695
    %v457 = vpow.pop %v456
    %v458 = vsel %vm150, %v457, 0.0
    %459 = vadd.xlane.f32.xlu0 %v458
    %v460 = vpop.xlane.xlu0 %459
    %v461 = vrcp.pop %v460
    %v462 = vmul.f32 %v460, %v461
    %v463 = vsub.f32 1.0, %v462
    %v464 = vmul.f32 %v461, %v463
    %v465 = vadd.f32 %v461, %v464
    %vm466 = vweird.f32 %v460
    %vm467 = vweird.f32 %v461
    %vm468 = vmor %vm466, %vm467
    %v469 = vsel %vm468, %v461, %v465
    %v470 = vand.u32 2147483647, %v460
    %vm471 = vcmp.eq.f32.partialorder %v470, 8.507059e+37
    %v472 = vand.u32 %v460, 2147483648
    %v473 = vor.u32 1.1754944e-38, %v472
    %v474 = vsel %vm471, %v473, %v469
    %v475 = vmul.f32 %v457, %v474
    %v476 = vsel %vm103, %v475, 0.0
    %477 = vrot.lane.b32.xlu0 %v73, 32
    %v478 = vpop.permute.xlu0 %477
    %v481 = vsel %vm150, %v476, 0
    %483 = vmatpush.msra.mxu0 0.0
    %484 = vmatpush.msra.mxu0 0.0
    %485 = vmatpush.msra.mxu0 0.0
    %486 = vmatpush.msra.mxu0 0.0
    %487 = vmatpush.msra.mxu0 0.0
    %488 = vmatpush.msra.mxu0 0.0
    %489 = vmatpush.msra.mxu0 0.0
    %490 = vmatpush.msra.mxu0 0.0
    %491 = vmatpush.msra.mxu0 0.0
    %492 = vmatpush.msra.mxu0 0.0
    %493 = vmatpush.msra.mxu0 0.0
    %494 = vmatpush.msra.mxu0 0.0
    %495 = vmatpush.msra.mxu0 0.0
    %496 = vmatpush.msra.mxu0 0.0
    %497 = vmatpush.msra.mxu0 0.0
    %498 = vmatpush.msra.mxu0 %v478
    %499 = vmatmul.f32.gmra.mxu0 %v481
    %v500 = vpop.f32.mrf.mxu0
    %v501 = vadd.f32 0.0, %v500
    %502 = vdwg.mxu0
    %vm503 = vcmp.gt.f32.partialorder %v501, 0.0
    %v504 = vmul.f32 %v501, 1.442695
    %v505 = vpow.pop %v504
    %v506 = vsub.f32 %v505, 1.0
    %v507 = vsel %vm503, %v501, %v506
    %509 = vrot.lane.b32.xlu0 %v305, 32
    %v510 = vpop.permute.xlu0 %509
    %513 = vrot.lane.b32.xlu0 %v406, 64
    %v514 = vpop.permute.xlu0 %513
    %517 = vrot.lane.b32.xlu0 %v507, 96
    %v518 = vpop.permute.xlu0 %517
    %v520 = vsel %vm48, %v203, %v510
    %vm521 = vcmask 523264
    %v522 = vsel %vm521, %v520, %v514
    %vm523 = vcmask 785408
    %v524 = vsel %vm523, %v522, %v518
    %v526 = vperm.slane %v45, 0
    %528 = vmatpush.msra.mxu0 %v44
    %529 = vmatpush.msra.mxu0 %v43
    %530 = vmatpush.msra.mxu0 %v42
    %531 = vmatpush.msra.mxu0 %v41
    %532 = vmatpush.msra.mxu0 %v40
    %533 = vmatpush.msra.mxu0 %v39
    %534 = vmatpush.msra.mxu0 %v38
    %535 = vmatpush.msra.mxu0 %v37
    %536 = vmatpush.msra.mxu0 %v36
    %537 = vmatpush.msra.mxu0 %v35
    %538 = vmatpush.msra.mxu0 %v34
    %539 = vmatpush.msra.mxu0 %v33
    %540 = vmatpush.msra.mxu0 %v32
    %541 = vmatpush.msra.mxu0 %v31
    %542 = vmatpush.msra.mxu0 %v30
    %543 = vmatpush.msra.mxu0 %v29
    %544 = vmatmul.f32.gmra.mxu0 %v524
    %v545 = vpop.f32.mrf.mxu0
    %v546 = vadd.f32 %v526, %v545
    %547 = vdwg.mxu0
    %v548 = vadd.f32 %v546, %v101
    %v549 = vsel %vm48, %v548, 0.0
    %550 = vadd.xlane.f32.xlu0 %v549
    %v551 = vpop.xlane.xlu0 %550
    %v552 = vrcp.pop 32.0
    %v553 = vmul.f32 32.0, %v552
    %v554 = vsub.f32 1.0, %v553
    %v555 = vmul.f32 %v552, %v554
    %v556 = vadd.f32 %v552, %v555
    %vm557 = vweird.f32 %v552
    %v558 = vsel %vm557, %v552, %v556
    %v559 = vmul.f32 %v551, %v558
    %v560 = vsub.f32 %v548, %v559
    %v561 = vmul.f32 %v560, %v560
    %v562 = vsel %vm48, %v561, 0.0
    %563 = vadd.xlane.f32.xlu0 %v562
    %v564 = vpop.xlane.xlu0 %563
    %v565 = vmul.f32 %v564, %v558
    %v566 = vadd.f32 %v565, 1e-05
    %v567 = vrsqrt.pop %v566
    %v568 = vmul.f32 %v567, %v566
    %v569 = vmul.f32 %v568, %v567
    %v570 = vmul.f32 0.5, %v569
    %v571 = vsub.f32 1.5, %v570
    %v572 = vmul.f32 %v567, %v571
    %vm573 = vweird.f32 %v566
    %vm574 = vweird.f32 %v567
    %vm575 = vmor %vm573, %vm574
    %v576 = vsel %vm575, %v567, %v572
    %v577 = vmul.f32 %v560, %v576
    %578 = vst.msk [vmem:[#allocation2] sm:$0xff] %vm48, %v577
    %s579 = scalar_lea.vmem %s0, 8
    %v580 = vld [vmem:[%s579] sm:$0xff]
    %s581 = scalar_lea.vmem %s1, 8
    %v582 = vld [vmem:[%s581] sm:$0xff]
    %vm583 = vcmp.gt.f32.partialorder %v582, 0.0
    %585 = vrot.lane.b32.xlu0 %v99, 124
    %v586 = vpop.permute.xlu0 %585
    %588 = vxpose.xlu0.b32.start [1/16] %v586, 128
    %589 = vxpose.xlu0.b32.cont [2/16] 0.0, 128
    %590 = vxpose.xlu0.b32.cont [3/16] 0.0, 128
    %591 = vxpose.xlu0.b32.cont [4/16] 0.0, 128
    %592 = vxpose.xlu0.b32.cont [5/16] 0.0, 128
    %593 = vxpose.xlu0.b32.cont [6/16] 0.0, 128
    %594 = vxpose.xlu0.b32.cont [7/16] 0.0, 128
    %595 = vxpose.xlu0.b32.cont [8/16] 0.0, 128
    %596 = vxpose.xlu0.b32.cont [9/16] 0.0, 128
    %597 = vxpose.xlu0.b32.cont [10/16] 0.0, 128
    %598 = vxpose.xlu0.b32.cont [11/16] 0.0, 128
    %599 = vxpose.xlu0.b32.cont [12/16] 0.0, 128
    %600 = vxpose.xlu0.b32.cont [13/16] 0.0, 128
    %601 = vxpose.xlu0.b32.cont [14/16] 0.0, 128
    %602 = vxpose.xlu0.b32.cont [15/16] 0.0, 128
    %603 = vxpose.xlu0.b32.end [16/16] 0.0, 128
    %v604 = vpop.trf.xlu0
    %v605 = vpop.trf.xlu0
    %v606 = vpop.trf.xlu0
    %v607 = vpop.trf.xlu0
    %v608 = vpop.trf.xlu0
    %v609 = vpop.trf.xlu0
    %v610 = vpop.trf.xlu0
    %v611 = vpop.trf.xlu0
    %v612 = vpop.trf.xlu0
    %v613 = vpop.trf.xlu0
    %v614 = vpop.trf.xlu0
    %v615 = vpop.trf.xlu0
    %v616 = vpop.trf.xlu0
    %v617 = vpop.trf.xlu0
    %v618 = vpop.trf.xlu0
    %v619 = vpop.trf.xlu0
    %620 = vset.pattern.permute.xlu0 0
    %621 = vperm.xlu0 %620, %v99
    %v622 = vpop.permute.xlu0 %621
    %v624 = vperm.slane %v604, 0
    %v625 = vmul.f32 %v622, %v624
    %vm626 = vcmp.ge.f32.partialorder %v625, 0.0
    %v627 = vmul.f32 %v625, 0.01
    %v628 = vsel %vm626, %v625, %v627
    %v629 = vsel %vm583, %v628, -9e+15
    %v630 = vsel %vm150, %v629, -inf
    %631 = vmax.xlane.f32.xlu0 %v630
    %v632 = vpop.xlane.xlu0 %631
    %v633 = vsub.f32 %v629, %v632
    %v634 = vmul.f32 %v633, 1.442695
    %v635 = vpow.pop %v634
    %v636 = vsel %vm150, %v635, 0.0
    %637 = vadd.xlane.f32.xlu0 %v636
    %v638 = vpop.xlane.xlu0 %637
    %v639 = vrcp.pop %v638
    %v640 = vmul.f32 %v638, %v639
    %v641 = vsub.f32 1.0, %v640
    %v642 = vmul.f32 %v639, %v641
    %v643 = vadd.f32 %v639, %v642
    %vm644 = vweird.f32 %v638
    %vm645 = vweird.f32 %v639
    %vm646 = vmor %vm644, %vm645
    %v647 = vsel %vm646, %v639, %v643
    %v648 = vand.u32 2147483647, %v638
    %vm649 = vcmp.eq.f32.partialorder %v648, 8.507059e+37
    %v650 = vand.u32 %v638, 2147483648
    %v651 = vor.u32 1.1754944e-38, %v650
    %v652 = vsel %vm649, %v651, %v647
    %v653 = vmul.f32 %v635, %v652
    %v654 = vsel %vm583, %v653, 0.0
    %v656 = vsel %vm150, %v654, 0
    %658 = vmatpush.msra.mxu0 0.0
    %659 = vmatpush.msra.mxu0 0.0
    %660 = vmatpush.msra.mxu0 0.0
    %661 = vmatpush.msra.mxu0 0.0
    %662 = vmatpush.msra.mxu0 0.0
    %663 = vmatpush.msra.mxu0 0.0
    %664 = vmatpush.msra.mxu0 0.0
    %665 = vmatpush.msra.mxu0 0.0
    %666 = vmatpush.msra.mxu0 0.0
    %667 = vmatpush.msra.mxu0 0.0
    %668 = vmatpush.msra.mxu0 0.0
    %669 = vmatpush.msra.mxu0 0.0
    %670 = vmatpush.msra.mxu0 0.0
    %671 = vmatpush.msra.mxu0 0.0
    %672 = vmatpush.msra.mxu0 0.0
    %673 = vmatpush.msra.mxu0 %v76
    %674 = vmatmul.f32.gmra.mxu0 %v656
    %v675 = vpop.f32.mrf.mxu0
    %v676 = vadd.f32 0.0, %v675
    %677 = vdwg.mxu0
    %vm678 = vcmp.gt.f32.partialorder %v676, 0.0
    %v679 = vmul.f32 %v676, 1.442695
    %v680 = vpow.pop %v679
    %v681 = vsub.f32 %v680, 1.0
    %v682 = vsel %vm678, %v676, %v681
    %683 = vrot.lane.b32.xlu0 %v99, 123
    %v684 = vpop.permute.xlu0 %683
    %686 = vxpose.xlu0.b32.start [1/16] %v684, 128
    %687 = vxpose.xlu0.b32.cont [2/16] 0.0, 128
    %688 = vxpose.xlu0.b32.cont [3/16] 0.0, 128
    %689 = vxpose.xlu0.b32.cont [4/16] 0.0, 128
    %690 = vxpose.xlu0.b32.cont [5/16] 0.0, 128
    %691 = vxpose.xlu0.b32.cont [6/16] 0.0, 128
    %692 = vxpose.xlu0.b32.cont [7/16] 0.0, 128
    %693 = vxpose.xlu0.b32.cont [8/16] 0.0, 128
    %694 = vxpose.xlu0.b32.cont [9/16] 0.0, 128
    %695 = vxpose.xlu0.b32.cont [10/16] 0.0, 128
    %696 = vxpose.xlu0.b32.cont [11/16] 0.0, 128
    %697 = vxpose.xlu0.b32.cont [12/16] 0.0, 128
    %698 = vxpose.xlu0.b32.cont [13/16] 0.0, 128
    %699 = vxpose.xlu0.b32.cont [14/16] 0.0, 128
    %700 = vxpose.xlu0.b32.cont [15/16] 0.0, 128
    %701 = vxpose.xlu0.b32.end [16/16] 0.0, 128
    %v702 = vpop.trf.xlu0
    %v703 = vpop.trf.xlu0
    %v704 = vpop.trf.xlu0
    %v705 = vpop.trf.xlu0
    %v706 = vpop.trf.xlu0
    %v707 = vpop.trf.xlu0
    %v708 = vpop.trf.xlu0
    %v709 = vpop.trf.xlu0
    %v710 = vpop.trf.xlu0
    %v711 = vpop.trf.xlu0
    %v712 = vpop.trf.xlu0
    %v713 = vpop.trf.xlu0
    %v714 = vpop.trf.xlu0
    %v715 = vpop.trf.xlu0
    %v716 = vpop.trf.xlu0
    %v717 = vpop.trf.xlu0
    %718 = vset.pattern.permute.xlu0 1
    %719 = vperm.xlu0 %718, %v99
    %v720 = vpop.permute.xlu0 %719
    %v722 = vperm.slane %v702, 0
    %v723 = vmul.f32 %v720, %v722
    %vm724 = vcmp.ge.f32.partialorder %v723, 0.0
    %v725 = vmul.f32 %v723, 0.01
    %v726 = vsel %vm724, %v723, %v725
    %v727 = vsel %vm583, %v726, -9e+15
    %v728 = vsel %vm150, %v727, -inf
    %729 = vmax.xlane.f32.xlu0 %v728
    %v730 = vpop.xlane.xlu0 %729
    %v731 = vsub.f32 %v727, %v730
    %v732 = vmul.f32 %v731, 1.442695
    %v733 = vpow.pop %v732
    %v734 = vsel %vm150, %v733, 0.0
    %735 = vadd.xlane.f32.xlu0 %v734
    %v736 = vpop.xlane.xlu0 %735
    %v737 = vrcp.pop %v736
    %v738 = vmul.f32 %v736, %v737
    %v739 = vsub.f32 1.0, %v738
    %v740 = vmul.f32 %v737, %v739
    %v741 = vadd.f32 %v737, %v740
    %vm742 = vweird.f32 %v736
    %vm743 = vweird.f32 %v737
    %vm744 = vmor %vm742, %vm743
    %v745 = vsel %vm744, %v737, %v741
    %v746 = vand.u32 2147483647, %v736
    %vm747 = vcmp.eq.f32.partialorder %v746, 8.507059e+37
    %v748 = vand.u32 %v736, 2147483648
    %v749 = vor.u32 1.1754944e-38, %v748
    %v750 = vsel %vm747, %v749, %v745
    %v751 = vmul.f32 %v733, %v750
    %v752 = vsel %vm583, %v751, 0.0
    %754 = vrot.lane.b32.xlu0 %v76, 96
    %v755 = vpop.permute.xlu0 %754
    %v758 = vsel %vm150, %v752, 0
    %760 = vmatpush.msra.mxu0 0.0
    %761 = vmatpush.msra.mxu0 0.0
    %762 = vmatpush.msra.mxu0 0.0
    %763 = vmatpush.msra.mxu0 0.0
    %764 = vmatpush.msra.mxu0 0.0
    %765 = vmatpush.msra.mxu0 0.0
    %766 = vmatpush.msra.mxu0 0.0
    %767 = vmatpush.msra.mxu0 0.0
    %768 = vmatpush.msra.mxu0 0.0
    %769 = vmatpush.msra.mxu0 0.0
    %770 = vmatpush.msra.mxu0 0.0
    %771 = vmatpush.msra.mxu0 0.0
    %772 = vmatpush.msra.mxu0 0.0
    %773 = vmatpush.msra.mxu0 0.0
    %774 = vmatpush.msra.mxu0 0.0
    %775 = vmatpush.msra.mxu0 %v755
    %776 = vmatmul.f32.gmra.mxu0 %v758
    %v777 = vpop.f32.mrf.mxu0
    %v778 = vadd.f32 0.0, %v777
    %779 = vdwg.mxu0
    %vm780 = vcmp.gt.f32.partialorder %v778, 0.0
    %v781 = vmul.f32 %v778, 1.442695
    %v782 = vpow.pop %v781
    %v783 = vsub.f32 %v782, 1.0
    %v784 = vsel %vm780, %v778, %v783
    %785 = vrot.lane.b32.xlu0 %v99, 122
    %v786 = vpop.permute.xlu0 %785
    %788 = vxpose.xlu0.b32.start [1/16] %v786, 128
    %789 = vxpose.xlu0.b32.cont [2/16] 0.0, 128
    %790 = vxpose.xlu0.b32.cont [3/16] 0.0, 128
    %791 = vxpose.xlu0.b32.cont [4/16] 0.0, 128
    %792 = vxpose.xlu0.b32.cont [5/16] 0.0, 128
    %793 = vxpose.xlu0.b32.cont [6/16] 0.0, 128
    %794 = vxpose.xlu0.b32.cont [7/16] 0.0, 128
    %795 = vxpose.xlu0.b32.cont [8/16] 0.0, 128
    %796 = vxpose.xlu0.b32.cont [9/16] 0.0, 128
    %797 = vxpose.xlu0.b32.cont [10/16] 0.0, 128
    %798 = vxpose.xlu0.b32.cont [11/16] 0.0, 128
    %799 = vxpose.xlu0.b32.cont [12/16] 0.0, 128
    %800 = vxpose.xlu0.b32.cont [13/16] 0.0, 128
    %801 = vxpose.xlu0.b32.cont [14/16] 0.0, 128
    %802 = vxpose.xlu0.b32.cont [15/16] 0.0, 128
    %803 = vxpose.xlu0.b32.end [16/16] 0.0, 128
    %v804 = vpop.trf.xlu0
    %v805 = vpop.trf.xlu0
    %v806 = vpop.trf.xlu0
    %v807 = vpop.trf.xlu0
    %v808 = vpop.trf.xlu0
    %v809 = vpop.trf.xlu0
    %v810 = vpop.trf.xlu0
    %v811 = vpop.trf.xlu0
    %v812 = vpop.trf.xlu0
    %v813 = vpop.trf.xlu0
    %v814 = vpop.trf.xlu0
    %v815 = vpop.trf.xlu0
    %v816 = vpop.trf.xlu0
    %v817 = vpop.trf.xlu0
    %v818 = vpop.trf.xlu0
    %v819 = vpop.trf.xlu0
    %820 = vset.pattern.permute.xlu0 2
    %821 = vperm.xlu0 %820, %v99
    %v822 = vpop.permute.xlu0 %821
    %v824 = vperm.slane %v804, 0
    %v825 = vmul.f32 %v822, %v824
    %vm826 = vcmp.ge.f32.partialorder %v825, 0.0
    %v827 = vmul.f32 %v825, 0.01
    %v828 = vsel %vm826, %v825, %v827
    %v829 = vsel %vm583, %v828, -9e+15
    %v830 = vsel %vm150, %v829, -inf
    %831 = vmax.xlane.f32.xlu0 %v830
    %v832 = vpop.xlane.xlu0 %831
    %v833 = vsub.f32 %v829, %v832
    %v834 = vmul.f32 %v833, 1.442695
    %v835 = vpow.pop %v834
    %v836 = vsel %vm150, %v835, 0.0
    %837 = vadd.xlane.f32.xlu0 %v836
    %v838 = vpop.xlane.xlu0 %837
    %v839 = vrcp.pop %v838
    %v840 = vmul.f32 %v838, %v839
    %v841 = vsub.f32 1.0, %v840
    %v842 = vmul.f32 %v839, %v841
    %v843 = vadd.f32 %v839, %v842
    %vm844 = vweird.f32 %v838
    %vm845 = vweird.f32 %v839
    %vm846 = vmor %vm844, %vm845
    %v847 = vsel %vm846, %v839, %v843
    %v848 = vand.u32 2147483647, %v838
    %vm849 = vcmp.eq.f32.partialorder %v848, 8.507059e+37
    %v850 = vand.u32 %v838, 2147483648
    %v851 = vor.u32 1.1754944e-38, %v850
    %v852 = vsel %vm849, %v851, %v847
    %v853 = vmul.f32 %v835, %v852
    %v854 = vsel %vm583, %v853, 0.0
    %855 = vrot.lane.b32.xlu0 %v76, 64
    %v856 = vpop.permute.xlu0 %855
    %v859 = vsel %vm150, %v854, 0
    %861 = vmatpush.msra.mxu0 0.0
    %862 = vmatpush.msra.mxu0 0.0
    %863 = vmatpush.msra.mxu0 0.0
    %864 = vmatpush.msra.mxu0 0.0
    %865 = vmatpush.msra.mxu0 0.0
    %866 = vmatpush.msra.mxu0 0.0
    %867 = vmatpush.msra.mxu0 0.0
    %868 = vmatpush.msra.mxu0 0.0
    %869 = vmatpush.msra.mxu0 0.0
    %870 = vmatpush.msra.mxu0 0.0
    %871 = vmatpush.msra.mxu0 0.0
    %872 = vmatpush.msra.mxu0 0.0
    %873 = vmatpush.msra.mxu0 0.0
    %874 = vmatpush.msra.mxu0 0.0
    %875 = vmatpush.msra.mxu0 0.0
    %876 = vmatpush.msra.mxu0 %v856
    %877 = vmatmul.f32.gmra.mxu0 %v859
    %v878 = vpop.f32.mrf.mxu0
    %v879 = vadd.f32 0.0, %v878
    %880 = vdwg.mxu0
    %vm881 = vcmp.gt.f32.partialorder %v879, 0.0
    %v882 = vmul.f32 %v879, 1.442695
    %v883 = vpow.pop %v882
    %v884 = vsub.f32 %v883, 1.0
    %v885 = vsel %vm881, %v879, %v884
    %886 = vrot.lane.b32.xlu0 %v99, 121
    %v887 = vpop.permute.xlu0 %886
    %889 = vxpose.xlu0.b32.start [1/16] %v887, 128
    %890 = vxpose.xlu0.b32.cont [2/16] 0.0, 128
    %891 = vxpose.xlu0.b32.cont [3/16] 0.0, 128
    %892 = vxpose.xlu0.b32.cont [4/16] 0.0, 128
    %893 = vxpose.xlu0.b32.cont [5/16] 0.0, 128
    %894 = vxpose.xlu0.b32.cont [6/16] 0.0, 128
    %895 = vxpose.xlu0.b32.cont [7/16] 0.0, 128
    %896 = vxpose.xlu0.b32.cont [8/16] 0.0, 128
    %897 = vxpose.xlu0.b32.cont [9/16] 0.0, 128
    %898 = vxpose.xlu0.b32.cont [10/16] 0.0, 128
    %899 = vxpose.xlu0.b32.cont [11/16] 0.0, 128
    %900 = vxpose.xlu0.b32.cont [12/16] 0.0, 128
    %901 = vxpose.xlu0.b32.cont [13/16] 0.0, 128
    %902 = vxpose.xlu0.b32.cont [14/16] 0.0, 128
    %903 = vxpose.xlu0.b32.cont [15/16] 0.0, 128
    %904 = vxpose.xlu0.b32.end [16/16] 0.0, 128
    %v905 = vpop.trf.xlu0
    %v906 = vpop.trf.xlu0
    %v907 = vpop.trf.xlu0
    %v908 = vpop.trf.xlu0
    %v909 = vpop.trf.xlu0
    %v910 = vpop.trf.xlu0
    %v911 = vpop.trf.xlu0
    %v912 = vpop.trf.xlu0
    %v913 = vpop.trf.xlu0
    %v914 = vpop.trf.xlu0
    %v915 = vpop.trf.xlu0
    %v916 = vpop.trf.xlu0
    %v917 = vpop.trf.xlu0
    %v918 = vpop.trf.xlu0
    %v919 = vpop.trf.xlu0
    %v920 = vpop.trf.xlu0
    %921 = vset.pattern.permute.xlu0 3
    %922 = vperm.xlu0 %921, %v99
    %v923 = vpop.permute.xlu0 %922
    %v925 = vperm.slane %v905, 0
    %v926 = vmul.f32 %v923, %v925
    %vm927 = vcmp.ge.f32.partialorder %v926, 0.0
    %v928 = vmul.f32 %v926, 0.01
    %v929 = vsel %vm927, %v926, %v928
    %v930 = vsel %vm583, %v929, -9e+15
    %v931 = vsel %vm150, %v930, -inf
    %932 = vmax.xlane.f32.xlu0 %v931
    %v933 = vpop.xlane.xlu0 %932
    %v934 = vsub.f32 %v930, %v933
    %v935 = vmul.f32 %v934, 1.442695
    %v936 = vpow.pop %v935
    %v937 = vsel %vm150, %v936, 0.0
    %938 = vadd.xlane.f32.xlu0 %v937
    %v939 = vpop.xlane.xlu0 %938
    %v940 = vrcp.pop %v939
    %v941 = vmul.f32 %v939, %v940
    %v942 = vsub.f32 1.0, %v941
    %v943 = vmul.f32 %v940, %v942
    %v944 = vadd.f32 %v940, %v943
    %vm945 = vweird.f32 %v939
    %vm946 = vweird.f32 %v940
    %vm947 = vmor %vm945, %vm946
    %v948 = vsel %vm947, %v940, %v944
    %v949 = vand.u32 2147483647, %v939
    %vm950 = vcmp.eq.f32.partialorder %v949, 8.507059e+37
    %v951 = vand.u32 %v939, 2147483648
    %v952 = vor.u32 1.1754944e-38, %v951
    %v953 = vsel %vm950, %v952, %v948
    %v954 = vmul.f32 %v936, %v953
    %v955 = vsel %vm583, %v954, 0.0
    %956 = vrot.lane.b32.xlu0 %v76, 32
    %v957 = vpop.permute.xlu0 %956
    %v960 = vsel %vm150, %v955, 0
    %962 = vmatpush.msra.mxu0 0.0
    %963 = vmatpush.msra.mxu0 0.0
    %964 = vmatpush.msra.mxu0 0.0
    %965 = vmatpush.msra.mxu0 0.0
    %966 = vmatpush.msra.mxu0 0.0
    %967 = vmatpush.msra.mxu0 0.0
    %968 = vmatpush.msra.mxu0 0.0
    %969 = vmatpush.msra.mxu0 0.0
    %970 = vmatpush.msra.mxu0 0.0
    %971 = vmatpush.msra.mxu0 0.0
    %972 = vmatpush.msra.mxu0 0.0
    %973 = vmatpush.msra.mxu0 0.0
    %974 = vmatpush.msra.mxu0 0.0
    %975 = vmatpush.msra.mxu0 0.0
    %976 = vmatpush.msra.mxu0 0.0
    %977 = vmatpush.msra.mxu0 %v957
    %978 = vmatmul.f32.gmra.mxu0 %v960
    %v979 = vpop.f32.mrf.mxu0
    %v980 = vadd.f32 0.0, %v979
    %981 = vdwg.mxu0
    %vm982 = vcmp.gt.f32.partialorder %v980, 0.0
    %v983 = vmul.f32 %v980, 1.442695
    %v984 = vpow.pop %v983
    %v985 = vsub.f32 %v984, 1.0
    %v986 = vsel %vm982, %v980, %v985
    %988 = vrot.lane.b32.xlu0 %v784, 32
    %v989 = vpop.permute.xlu0 %988
    %992 = vrot.lane.b32.xlu0 %v885, 64
    %v993 = vpop.permute.xlu0 %992
    %996 = vrot.lane.b32.xlu0 %v986, 96
    %v997 = vpop.permute.xlu0 %996
    %v999 = vsel %vm48, %v682, %v989
    %v1000 = vsel %vm521, %v999, %v993
    %v1001 = vsel %vm523, %v1000, %v997
    %1002 = vmatpush.msra.mxu0 %v44
    %1003 = vmatpush.msra.mxu0 %v43
    %1004 = vmatpush.msra.mxu0 %v42
    %1005 = vmatpush.msra.mxu0 %v41
    %1006 = vmatpush.msra.mxu0 %v40
    %1007 = vmatpush.msra.mxu0 %v39
    %1008 = vmatpush.msra.mxu0 %v38
    %1009 = vmatpush.msra.mxu0 %v37
    %1010 = vmatpush.msra.mxu0 %v36
    %1011 = vmatpush.msra.mxu0 %v35
    %1012 = vmatpush.msra.mxu0 %v34
    %1013 = vmatpush.msra.mxu0 %v33
    %1014 = vmatpush.msra.mxu0 %v32
    %1015 = vmatpush.msra.mxu0 %v31
    %1016 = vmatpush.msra.mxu0 %v30
    %1017 = vmatpush.msra.mxu0 %v29
    %1018 = vmatmul.f32.gmra.mxu0 %v1001
    %v1019 = vpop.f32.mrf.mxu0
    %v1020 = vadd.f32 %v526, %v1019
    %1021 = vdwg.mxu0
    %v1022 = vadd.f32 %v1020, %v580
    %v1023 = vsel %vm48, %v1022, 0.0
    %1024 = vadd.xlane.f32.xlu0 %v1023
    %v1025 = vpop.xlane.xlu0 %1024
    %v1026 = vmul.f32 %v1025, %v558
    %v1027 = vsub.f32 %v1022, %v1026
    %v1028 = vmul.f32 %v1027, %v1027
    %v1029 = vsel %vm48, %v1028, 0.0
    %1030 = vadd.xlane.f32.xlu0 %v1029
    %v1031 = vpop.xlane.xlu0 %1030
    %v1032 = vmul.f32 %v1031, %v558
    %v1033 = vadd.f32 %v1032, 1e-05
    %v1034 = vrsqrt.pop %v1033
    %v1035 = vmul.f32 %v1034, %v1033
    %v1036 = vmul.f32 %v1035, %v1034
    %v1037 = vmul.f32 0.5, %v1036
    %v1038 = vsub.f32 1.5, %v1037
    %v1039 = vmul.f32 %v1034, %v1038
    %vm1040 = vweird.f32 %v1033
    %vm1041 = vweird.f32 %v1034
    %vm1042 = vmor %vm1040, %vm1041
    %v1043 = vsel %vm1042, %v1034, %v1039
    %v1044 = vmul.f32 %v1027, %v1043
    %s1045 = scalar_lea.vmem [#allocation2], 8
    %1046 = vst.msk [vmem:[%s1045] sm:$0xff] %vm48, %v1044
    // Predicated region
    $region22: #{tpu_custom_call.1} parent=1 // pred_check
      _
    $region23: #{tpu_custom_call.1} parent=1 // pred_check_branch
      %1048 = sbr.rel (0) target = $region25
    $region24: #{tpu_custom_call.1} parent=1 // pred_region
      %1050 = vsyncadd [#allocation3], 0
      %s1051 = sshll.u32 [#allocation2], 4
      %s1052 = int_to_ptr.vmem [resolvable:$true] %s1051
      %s1053 = sshll.u32 %s5, 4
      %s1054 = int_to_ptr.hbm [resolvable:$true] %s1053
      %1059 = dma.vmem_to_hbm [thread:$0]  %s1052, 256, %s1054, [#allocation3], 128, 128, 8
    $region25: #{tpu_custom_call.1} parent=1 // pred_fallthru
      _
    // Predicated region
    $region26: #{tpu_custom_call.1} parent=1 // pred_check
      _
    $region27: #{tpu_custom_call.1} parent=1 // pred_check_branch
      %1061 = sbr.rel (0) target = $region29
    $region28: #{tpu_custom_call.1} parent=1 // pred_region
      %1063 = dma.done [#allocation3], 256
    $region29: #{tpu_custom_call.1} parent=1 // pred_fallthru
      _
    %1064 = vsyncpa [#allocation3], 1

</llo_original>
